<compile_context>
chip_gen: v7x
topology: tpu7x:2x2x1
jax: 0.10.0
libtpu: 0.0.40
codegen_flags: <defaults>
</compile_context>

<pallas_src>
import functools

import jax
import jax.numpy as jnp
from jax.experimental import pallas as pl
from jax.experimental.pallas import tpu as pltpu


def _round_up(a, b):
    return (a + b - 1) // b * b


def _sublane_multiple(dtype):
    # Sub-32-bit dtypes pack along sublanes: 8 for f32, 16 for bf16, 32 for int8.
    bits = jnp.dtype(dtype).itemsize * 8
    return 8 * max(1, 32 // bits)


def _tiled_bytes(shape, dtype):
    """VMEM footprint of a block after (sublane, 128) tiling of the minor dims."""
    *lead, s, l = shape
    elems = 1
    for d in lead:
        elems *= d
    elems *= _round_up(s, _sublane_multiple(dtype)) * _round_up(l, 128)
    return elems * jnp.dtype(dtype).itemsize


def _shift_crop_kernel(h_off_ref, w_off_ref, x_ref, out_ref, pad_buf,
                       *, bsz, n, c, h, w, pad):
    """One grid step: reflect-pad a (bsz, c, h, w) block and crop each sample.

    h_off_ref, w_off_ref : SMEM scalar-prefetch refs, shape (n,), int32
    x_ref                : VMEM input block,  (bsz, c, h, w)
    out_ref              : VMEM output block, (bsz, c, h, w)
    pad_buf              : VMEM scratch,      (bsz, c, h + 2*pad, w + 2*pad)
    """
    step = pl.program_id(0)
    wp = w + 2 * pad  # padded width

    # ---- 1. Build the reflect-padded image for the whole sample batch --------
    # Interior (static offsets; cheap VPU copy, ~1 vreg store/cycle).
    pad_buf[:, :, pad:pad + h, pad:pad + w] = x_ref[...]

    # H (sublane) reflection borders, read straight from the input block.
    for t in range(pad):
        pad_buf[:, :, pad - 1 - t:pad - t, pad:pad + w] = \
            x_ref[:, :, 1 + t:2 + t, :]
        pad_buf[:, :, pad + h + t:pad + h + t + 1, pad:pad + w] = \
            x_ref[:, :, h - 2 - t:h - 1 - t, :]

    # W (lane) reflection borders (covers the corners because all rows above are
    # already valid).  One load + lane-concat + one masked store per side, so we
    # touch each vreg only twice instead of 2*pad times.
    left_src = pad_buf[:, :, :, pad + 1:2 * pad + 1]            # padded cols pad+1..2*pad
    pad_buf[:, :, :, 0:pad] = jnp.concatenate(
        [left_src[:, :, :, pad - 1 - d:pad - d] for d in range(pad)], axis=-1)
    right_src = pad_buf[:, :, :, w - 1:pad + w - 1]             # padded cols w-1..pad+w-2
    pad_buf[:, :, :, pad + w:wp] = jnp.concatenate(
        [right_src[:, :, :, pad - 1 - d:pad - d] for d in range(pad)], axis=-1)

    # ---- 2. Per-sample crop ---------------------------------------------------
    def crop_one(b, carry):
        # Clamp the tail of a cdiv grid: those samples' outputs are dropped by
        # Pallas' masked writeback, we just need in-bounds SMEM/VMEM accesses.
        idx = jnp.minimum(step * bsz + b, n - 1)
        hs = h_off_ref[idx]
        ws = w_off_ref[idx]

        # H crop: dynamic sublane-start slice (well supported, cheap).
        slab = pad_buf[pl.ds(b, 1), :, pl.ds(hs, h), :]          # (1, c, h, wp)

        # W crop: binary decomposition of the lane shift ws in [0, 2*pad] into
        # static lane rotations selected by scalar predicates (exact data
        # movement; the wrapped-in garbage lanes are never read because the
        # final slice keeps only cols [0, w) and ws <= 2*pad).
        res = slab
        shift = 1
        while shift <= 2 * pad:
            rolled = jnp.concatenate(
                [res[:, :, :, shift:], res[:, :, :, :shift]], axis=-1)
            res = jnp.where((ws & shift) != 0, rolled, res)
            shift *= 2

        out_ref[pl.ds(b, 1)] = res[:, :, :, :w]
        return carry

    jax.lax.fori_loop(0, bsz, crop_one, 0)


def random_shift_augmentation(x_nchw, h_off, w_off, *, pad=4, training=True,
                              max_samples_per_step=16,
                              vmem_block_budget_bytes=24 * 1024 * 1024,
                              core_parallel=False):
    """JAX/Pallas equivalent of RandomShiftAugmentation.forward.

    x_nchw: (n, c, h, w) array (NCHW, like PyTorch)
    h_off, w_off: (n,) integer offsets in [0, 2*pad] (the `torch.randint` draws)
    core_parallel: v7x knob — put CORE_PARALLEL on the batch axis to shard grid
        steps across the 2 TensorCores (default keeps the portable "parallel").
    """
    if not training or pad == 0:
        return x_nchw

    n, c, h, w = x_nchw.shape
    if pad >= h or pad >= w:
        raise ValueError("reflect padding requires pad < h and pad < w")

    # Safety clamp: keeps every in-kernel slice in bounds.  (Diverges from
    # PyTorch only for out-of-range offsets, which the module never produces.)
    h_off = jnp.clip(h_off.astype(jnp.int32), 0, 2 * pad)
    w_off = jnp.clip(w_off.astype(jnp.int32), 0, 2 * pad)

    dtype = x_nchw.dtype
    # dtype-aware per-sample VMEM: double-buffered in+out blocks + padded scratch.
    per_sample = (4 * _tiled_bytes((1, c, h, w), dtype)
                  + _tiled_bytes((1, c, h + 2 * pad, w + 2 * pad), dtype))
    cap = max(1, vmem_block_budget_bytes // max(1, per_sample))
    bsz = int(max(1, min(n, max_samples_per_step, cap)))
    num_steps = pl.cdiv(n, bsz)

    # Explicit scoped-VMEM limit: block footprint + headroom for the per-sample
    # slab / select-chain temporaries.  Works under v5e's 16 MiB default and
    # stays well inside v7x's 64 MiB physical VMEM.
    vmem_limit = int(min(
        bsz * per_sample
        + 4 * _tiled_bytes((1, c, h, w + 2 * pad), dtype)
        + (4 << 20),
        56 << 20))

    kernel = functools.partial(_shift_crop_kernel,
                               bsz=bsz, n=n, c=c, h=h, w=w, pad=pad)
    semantics = (pltpu.CORE_PARALLEL,) if core_parallel else ("parallel",)

    out = pl.pallas_call(
        kernel,
        out_shape=jax.ShapeDtypeStruct((n, c, h, w), dtype),
        grid_spec=pltpu.PrefetchScalarGridSpec(
            num_scalar_prefetch=2,                    # h_off, w_off land in SMEM
            grid=(num_steps,),                        # cdiv grid, tail masked
            in_specs=[
                pl.BlockSpec((bsz, c, h, w), lambda i, ho, wo: (i, 0, 0, 0)),
            ],
            out_specs=pl.BlockSpec((bsz, c, h, w), lambda i, ho, wo: (i, 0, 0, 0)),
            scratch_shapes=[
                pltpu.VMEM((bsz, c, h + 2 * pad, w + 2 * pad), dtype),
            ],
        ),
        compiler_params=pltpu.CompilerParams(
            dimension_semantics=semantics,
            vmem_limit_bytes=vmem_limit,
        ),
    )(h_off, w_off, x_nchw)

    return out


if __name__ == "__main__":
    key = jax.random.PRNGKey(0)

    def reference(x, h_off, w_off, pad):
        n, c, h, w = x.shape
        xp = jnp.pad(x, ((0, 0), (0, 0), (pad, pad), (pad, pad)), mode="reflect")
        return jnp.stack([
            jax.lax.dynamic_slice(
                xp[i], (0, int(h_off[i]), int(w_off[i])), (c, h, w))
            for i in range(n)
        ])

    configs = [
        # module-sized baseline                              bsz=2, grid=(1,)
        dict(n=2, c=4, h=16, w=16, pad=4, max_samples_per_step=16),
        # force one sample per step -> multi-step grid / program_id math
        dict(n=2, c=4, h=16, w=16, pad=4, max_samples_per_step=1),
        # cdiv grid with a masked tail (n=3, bsz=2 -> grid=2, tail=1)
        dict(n=3, c=4, h=16, w=16, pad=4, max_samples_per_step=2),
        # odd, non-tile-aligned shapes and a different pad
        dict(n=3, c=3, h=12, w=10, pad=3, max_samples_per_step=16),
    ]

    out = None
    for cfg in configs:
        key, kx, kh, kw = jax.random.split(key, 4)
        n, c, h, w, pad = cfg["n"], cfg["c"], cfg["h"], cfg["w"], cfg["pad"]
        x = jax.random.normal(kx, (n, c, h, w), dtype=jnp.float32)
        h_off = jax.random.randint(kh, (n,), 0, 2 * pad + 1, dtype=jnp.int32)
        w_off = jax.random.randint(kw, (n,), 0, 2 * pad + 1, dtype=jnp.int32)

        out = random_shift_augmentation(
            x, h_off, w_off, pad=pad, training=True,
            max_samples_per_step=cfg["max_samples_per_step"])
        out = jax.block_until_ready(out)

        ref = reference(x, h_off, w_off, pad)
        assert out.shape == x.shape and out.dtype == x.dtype
        # Pure data movement -> exact equality with the reference.
        assert jnp.array_equal(out, ref), f"Pallas kernel mismatch vs reference: {cfg}"

    # eval path is the identity, like the PyTorch module
    assert jnp.array_equal(
        random_shift_augmentation(x, h_off, w_off, pad=pad, training=False), x)

    print("KERNEL_OK")
</pallas_src>

<mosaic_0001>
module attributes {stable_mosaic.version = 11 : i64} {
  func.func @_shift_crop_kernel(%arg0: i32, %arg1: memref<2xi32, #tpu.memory_space<smem>>, %arg2: memref<2xi32, #tpu.memory_space<smem>>, %arg3: memref<2x4x16x16xf32, #tpu.memory_space<vmem>>, %arg4: memref<2x4x16x16xf32, #tpu.memory_space<vmem>>, %arg5: memref<2x4x24x24xf32, #tpu.memory_space<vmem>>) attributes {dimension_semantics = [#tpu.dimension_semantics<parallel>], iteration_bounds = array<i64: 1>, scalar_prefetch = 2 : i64, scratch_operands = 1 : i64, tpu.core_type = #tpu.core_type<tc>, window_params = [{transform_indices = @transform_0, window_bounds = array<i64: 2, 4, 16, 16>}, {transform_indices = @transform_1, window_bounds = array<i64: 2, 4, 16, 16>}]} {
    %c0 = arith.constant 0 : index
    %c0_0 = arith.constant 0 : index
    %c0_1 = arith.constant 0 : index
    %c0_2 = arith.constant 0 : index
    %0 = vector.load %arg3[%c0, %c0_0, %c0_1, %c0_2] : memref<2x4x16x16xf32, #tpu.memory_space<vmem>>, vector<2x4x16x16xf32>
    %c0_3 = arith.constant 0 : index
    %c0_4 = arith.constant 0 : index
    %c4 = arith.constant 4 : index
    %c4_5 = arith.constant 4 : index
    %1 = vector.load %arg5[%c0_3, %c0_4, %c4, %c4_5] : memref<2x4x24x24xf32, #tpu.memory_space<vmem>>, vector<2x4x16x16xf32>
    tpu.vector_store %arg5[%c0_3, %c0_4, %c4, %c4_5], %0 {strides = array<i32>} : memref<2x4x24x24xf32, #tpu.memory_space<vmem>>, vector<2x4x16x16xf32>,
    %c0_6 = arith.constant 0 : index
    %c0_7 = arith.constant 0 : index
    %c1 = arith.constant 1 : index
    %c0_8 = arith.constant 0 : index
    %2 = vector.load %arg3[%c0_6, %c0_7, %c1, %c0_8] : memref<2x4x16x16xf32, #tpu.memory_space<vmem>>, vector<2x4x1x16xf32>
    %c0_9 = arith.constant 0 : index
    %c0_10 = arith.constant 0 : index
    %c3 = arith.constant 3 : index
    %c4_11 = arith.constant 4 : index
    %3 = vector.load %arg5[%c0_9, %c0_10, %c3, %c4_11] : memref<2x4x24x24xf32, #tpu.memory_space<vmem>>, vector<2x4x1x16xf32>
    tpu.vector_store %arg5[%c0_9, %c0_10, %c3, %c4_11], %2 {strides = array<i32>} : memref<2x4x24x24xf32, #tpu.memory_space<vmem>>, vector<2x4x1x16xf32>,
    %c0_12 = arith.constant 0 : index
    %c0_13 = arith.constant 0 : index
    %c14 = arith.constant 14 : index
    %c0_14 = arith.constant 0 : index
    %4 = vector.load %arg3[%c0_12, %c0_13, %c14, %c0_14] : memref<2x4x16x16xf32, #tpu.memory_space<vmem>>, vector<2x4x1x16xf32>
    %c0_15 = arith.constant 0 : index
    %c0_16 = arith.constant 0 : index
    %c20 = arith.constant 20 : index
    %c4_17 = arith.constant 4 : index
    %5 = vector.load %arg5[%c0_15, %c0_16, %c20, %c4_17] : memref<2x4x24x24xf32, #tpu.memory_space<vmem>>, vector<2x4x1x16xf32>
    tpu.vector_store %arg5[%c0_15, %c0_16, %c20, %c4_17], %4 {strides = array<i32>} : memref<2x4x24x24xf32, #tpu.memory_space<vmem>>, vector<2x4x1x16xf32>,
    %c0_18 = arith.constant 0 : index
    %c0_19 = arith.constant 0 : index
    %c2 = arith.constant 2 : index
    %c0_20 = arith.constant 0 : index
    %6 = vector.load %arg3[%c0_18, %c0_19, %c2, %c0_20] : memref<2x4x16x16xf32, #tpu.memory_space<vmem>>, vector<2x4x1x16xf32>
    %c0_21 = arith.constant 0 : index
    %c0_22 = arith.constant 0 : index
    %c2_23 = arith.constant 2 : index
    %c4_24 = arith.constant 4 : index
    %7 = vector.load %arg5[%c0_21, %c0_22, %c2_23, %c4_24] : memref<2x4x24x24xf32, #tpu.memory_space<vmem>>, vector<2x4x1x16xf32>
    tpu.vector_store %arg5[%c0_21, %c0_22, %c2_23, %c4_24], %6 {strides = array<i32>} : memref<2x4x24x24xf32, #tpu.memory_space<vmem>>, vector<2x4x1x16xf32>,
    %c0_25 = arith.constant 0 : index
    %c0_26 = arith.constant 0 : index
    %c13 = arith.constant 13 : index
    %c0_27 = arith.constant 0 : index
    %8 = vector.load %arg3[%c0_25, %c0_26, %c13, %c0_27] : memref<2x4x16x16xf32, #tpu.memory_space<vmem>>, vector<2x4x1x16xf32>
    %c0_28 = arith.constant 0 : index
    %c0_29 = arith.constant 0 : index
    %c21 = arith.constant 21 : index
    %c4_30 = arith.constant 4 : index
    %9 = vector.load %arg5[%c0_28, %c0_29, %c21, %c4_30] : memref<2x4x24x24xf32, #tpu.memory_space<vmem>>, vector<2x4x1x16xf32>
    tpu.vector_store %arg5[%c0_28, %c0_29, %c21, %c4_30], %8 {strides = array<i32>} : memref<2x4x24x24xf32, #tpu.memory_space<vmem>>, vector<2x4x1x16xf32>,
    %c0_31 = arith.constant 0 : index
    %c0_32 = arith.constant 0 : index
    %c3_33 = arith.constant 3 : index
    %c0_34 = arith.constant 0 : index
    %10 = vector.load %arg3[%c0_31, %c0_32, %c3_33, %c0_34] : memref<2x4x16x16xf32, #tpu.memory_space<vmem>>, vector<2x4x1x16xf32>
    %c0_35 = arith.constant 0 : index
    %c0_36 = arith.constant 0 : index
    %c1_37 = arith.constant 1 : index
    %c4_38 = arith.constant 4 : index
    %11 = vector.load %arg5[%c0_35, %c0_36, %c1_37, %c4_38] : memref<2x4x24x24xf32, #tpu.memory_space<vmem>>, vector<2x4x1x16xf32>
    tpu.vector_store %arg5[%c0_35, %c0_36, %c1_37, %c4_38], %10 {strides = array<i32>} : memref<2x4x24x24xf32, #tpu.memory_space<vmem>>, vector<2x4x1x16xf32>,
    %c0_39 = arith.constant 0 : index
    %c0_40 = arith.constant 0 : index
    %c12 = arith.constant 12 : index
    %c0_41 = arith.constant 0 : index
    %12 = vector.load %arg3[%c0_39, %c0_40, %c12, %c0_41] : memref<2x4x16x16xf32, #tpu.memory_space<vmem>>, vector<2x4x1x16xf32>
    %c0_42 = arith.constant 0 : index
    %c0_43 = arith.constant 0 : index
    %c22 = arith.constant 22 : index
    %c4_44 = arith.constant 4 : index
    %13 = vector.load %arg5[%c0_42, %c0_43, %c22, %c4_44] : memref<2x4x24x24xf32, #tpu.memory_space<vmem>>, vector<2x4x1x16xf32>
    tpu.vector_store %arg5[%c0_42, %c0_43, %c22, %c4_44], %12 {strides = array<i32>} : memref<2x4x24x24xf32, #tpu.memory_space<vmem>>, vector<2x4x1x16xf32>,
    %c0_45 = arith.constant 0 : index
    %c0_46 = arith.constant 0 : index
    %c4_47 = arith.constant 4 : index
    %c0_48 = arith.constant 0 : index
    %14 = vector.load %arg3[%c0_45, %c0_46, %c4_47, %c0_48] : memref<2x4x16x16xf32, #tpu.memory_space<vmem>>, vector<2x4x1x16xf32>
    %c0_49 = arith.constant 0 : index
    %c0_50 = arith.constant 0 : index
    %c0_51 = arith.constant 0 : index
    %c4_52 = arith.constant 4 : index
    %15 = vector.load %arg5[%c0_49, %c0_50, %c0_51, %c4_52] : memref<2x4x24x24xf32, #tpu.memory_space<vmem>>, vector<2x4x1x16xf32>
    tpu.vector_store %arg5[%c0_49, %c0_50, %c0_51, %c4_52], %14 {strides = array<i32>} : memref<2x4x24x24xf32, #tpu.memory_space<vmem>>, vector<2x4x1x16xf32>,
    %c0_53 = arith.constant 0 : index
    %c0_54 = arith.constant 0 : index
    %c11 = arith.constant 11 : index
    %c0_55 = arith.constant 0 : index
    %16 = vector.load %arg3[%c0_53, %c0_54, %c11, %c0_55] : memref<2x4x16x16xf32, #tpu.memory_space<vmem>>, vector<2x4x1x16xf32>
    %c0_56 = arith.constant 0 : index
    %c0_57 = arith.constant 0 : index
    %c23 = arith.constant 23 : index
    %c4_58 = arith.constant 4 : index
    %17 = vector.load %arg5[%c0_56, %c0_57, %c23, %c4_58] : memref<2x4x24x24xf32, #tpu.memory_space<vmem>>, vector<2x4x1x16xf32>
    tpu.vector_store %arg5[%c0_56, %c0_57, %c23, %c4_58], %16 {strides = array<i32>} : memref<2x4x24x24xf32, #tpu.memory_space<vmem>>, vector<2x4x1x16xf32>,
    %c0_59 = arith.constant 0 : index
    %c0_60 = arith.constant 0 : index
    %c0_61 = arith.constant 0 : index
    %c5 = arith.constant 5 : index
    %18 = vector.load %arg5[%c0_59, %c0_60, %c0_61, %c5] : memref<2x4x24x24xf32, #tpu.memory_space<vmem>>, vector<2x4x24x4xf32>
    %19 = vector.extract_strided_slice %18 {offsets = [0, 0, 0, 3], sizes = [2, 4, 24, 1], strides = [1, 1, 1, 1]} : vector<2x4x24x4xf32> to vector<2x4x24x1xf32>
    %20 = vector.extract_strided_slice %18 {offsets = [0, 0, 0, 2], sizes = [2, 4, 24, 1], strides = [1, 1, 1, 1]} : vector<2x4x24x4xf32> to vector<2x4x24x1xf32>
    %21 = vector.extract_strided_slice %18 {offsets = [0, 0, 0, 1], sizes = [2, 4, 24, 1], strides = [1, 1, 1, 1]} : vector<2x4x24x4xf32> to vector<2x4x24x1xf32>
    %22 = vector.extract_strided_slice %18 {offsets = [0, 0, 0, 0], sizes = [2, 4, 24, 1], strides = [1, 1, 1, 1]} : vector<2x4x24x4xf32> to vector<2x4x24x1xf32>
    %23 = tpu.concatenate %19, %20, %21, %22 in 3 : vector<2x4x24x1xf32>, vector<2x4x24x1xf32>, vector<2x4x24x1xf32>, vector<2x4x24x1xf32> -> vector<2x4x24x4xf32>
    %c0_62 = arith.constant 0 : index
    %c0_63 = arith.constant 0 : index
    %c0_64 = arith.constant 0 : index
    %c0_65 = arith.constant 0 : index
    %24 = vector.load %arg5[%c0_62, %c0_63, %c0_64, %c0_65] : memref<2x4x24x24xf32, #tpu.memory_space<vmem>>, vector<2x4x24x4xf32>
    tpu.vector_store %arg5[%c0_62, %c0_63, %c0_64, %c0_65], %23 {strides = array<i32>} : memref<2x4x24x24xf32, #tpu.memory_space<vmem>>, vector<2x4x24x4xf32>,
    %c0_66 = arith.constant 0 : index
    %c0_67 = arith.constant 0 : index
    %c0_68 = arith.constant 0 : index
    %c15 = arith.constant 15 : index
    %25 = vector.load %arg5[%c0_66, %c0_67, %c0_68, %c15] : memref<2x4x24x24xf32, #tpu.memory_space<vmem>>, vector<2x4x24x4xf32>
    %26 = vector.extract_strided_slice %25 {offsets = [0, 0, 0, 3], sizes = [2, 4, 24, 1], strides = [1, 1, 1, 1]} : vector<2x4x24x4xf32> to vector<2x4x24x1xf32>
    %27 = vector.extract_strided_slice %25 {offsets = [0, 0, 0, 2], sizes = [2, 4, 24, 1], strides = [1, 1, 1, 1]} : vector<2x4x24x4xf32> to vector<2x4x24x1xf32>
    %28 = vector.extract_strided_slice %25 {offsets = [0, 0, 0, 1], sizes = [2, 4, 24, 1], strides = [1, 1, 1, 1]} : vector<2x4x24x4xf32> to vector<2x4x24x1xf32>
    %29 = vector.extract_strided_slice %25 {offsets = [0, 0, 0, 0], sizes = [2, 4, 24, 1], strides = [1, 1, 1, 1]} : vector<2x4x24x4xf32> to vector<2x4x24x1xf32>
    %30 = tpu.concatenate %26, %27, %28, %29 in 3 : vector<2x4x24x1xf32>, vector<2x4x24x1xf32>, vector<2x4x24x1xf32>, vector<2x4x24x1xf32> -> vector<2x4x24x4xf32>
    %c0_69 = arith.constant 0 : index
    %c0_70 = arith.constant 0 : index
    %c0_71 = arith.constant 0 : index
    %c20_72 = arith.constant 20 : index
    %31 = vector.load %arg5[%c0_69, %c0_70, %c0_71, %c20_72] : memref<2x4x24x24xf32, #tpu.memory_space<vmem>>, vector<2x4x24x4xf32>
    tpu.vector_store %arg5[%c0_69, %c0_70, %c0_71, %c20_72], %30 {strides = array<i32>} : memref<2x4x24x24xf32, #tpu.memory_space<vmem>>, vector<2x4x24x4xf32>,
    %c0_i32 = arith.constant 0 : i32
    %c2_i32 = arith.constant 2 : i32
    %32 = arith.addi %c0_i32, %c2_i32 : i32
    %c1_i32 = arith.constant 1 : i32
    scf.for %arg6 = %c0_i32 to %32 step %c1_i32  : i32 {
      %c2_i32_74 = arith.constant 2 : i32
      %33 = arith.muli %arg0, %c2_i32_74 : i32
      %34 = arith.addi %33, %arg6 : i32
      %c1_i32_75 = arith.constant 1 : i32
      %35 = arith.minsi %34, %c1_i32_75 : i32
      %36 = arith.index_cast %35 : i32 to index
      %37 = memref.load %arg1[%36] : memref<2xi32, #tpu.memory_space<smem>>
      %38 = arith.index_cast %35 : i32 to index
      %39 = memref.load %arg2[%38] : memref<2xi32, #tpu.memory_space<smem>>
      %40 = arith.index_cast %arg6 : i32 to index
      %c0_76 = arith.constant 0 : index
      %41 = arith.index_cast %37 : i32 to index
      %c0_77 = arith.constant 0 : index
      %42 = vector.load %arg5[%40, %c0_76, %41, %c0_77] : memref<2x4x24x24xf32, #tpu.memory_space<vmem>>, vector<1x4x16x24xf32>
      %43 = vector.extract_strided_slice %42 {offsets = [0, 0, 0, 1], sizes = [1, 4, 16, 23], strides = [1, 1, 1, 1]} : vector<1x4x16x24xf32> to vector<1x4x16x23xf32>
      %44 = vector.extract_strided_slice %42 {offsets = [0, 0, 0, 0], sizes = [1, 4, 16, 1], strides = [1, 1, 1, 1]} : vector<1x4x16x24xf32> to vector<1x4x16x1xf32>
      %45 = tpu.concatenate %43, %44 in 3 : vector<1x4x16x23xf32>, vector<1x4x16x1xf32> -> vector<1x4x16x24xf32>
      %c1_i32_78 = arith.constant 1 : i32
      %46 = arith.andi %39, %c1_i32_78 : i32
      %c0_i32_79 = arith.constant 0 : i32
      %47 = arith.cmpi ne, %46, %c0_i32_79 : i32
      %48 = arith.select %47, %45, %42 : vector<1x4x16x24xf32>
      %49 = vector.extract_strided_slice %48 {offsets = [0, 0, 0, 2], sizes = [1, 4, 16, 22], strides = [1, 1, 1, 1]} : vector<1x4x16x24xf32> to vector<1x4x16x22xf32>
      %50 = vector.extract_strided_slice %48 {offsets = [0, 0, 0, 0], sizes = [1, 4, 16, 2], strides = [1, 1, 1, 1]} : vector<1x4x16x24xf32> to vector<1x4x16x2xf32>
      %51 = tpu.concatenate %49, %50 in 3 : vector<1x4x16x22xf32>, vector<1x4x16x2xf32> -> vector<1x4x16x24xf32>
      %c2_i32_80 = arith.constant 2 : i32
      %52 = arith.andi %39, %c2_i32_80 : i32
      %c0_i32_81 = arith.constant 0 : i32
      %53 = arith.cmpi ne, %52, %c0_i32_81 : i32
      %54 = arith.select %53, %51, %48 : vector<1x4x16x24xf32>
      %55 = vector.extract_strided_slice %54 {offsets = [0, 0, 0, 4], sizes = [1, 4, 16, 20], strides = [1, 1, 1, 1]} : vector<1x4x16x24xf32> to vector<1x4x16x20xf32>
      %56 = vector.extract_strided_slice %54 {offsets = [0, 0, 0, 0], sizes = [1, 4, 16, 4], strides = [1, 1, 1, 1]} : vector<1x4x16x24xf32> to vector<1x4x16x4xf32>
      %57 = tpu.concatenate %55, %56 in 3 : vector<1x4x16x20xf32>, vector<1x4x16x4xf32> -> vector<1x4x16x24xf32>
      %c4_i32 = arith.constant 4 : i32
      %58 = arith.andi %39, %c4_i32 : i32
      %c0_i32_82 = arith.constant 0 : i32
      %59 = arith.cmpi ne, %58, %c0_i32_82 : i32
      %60 = arith.select %59, %57, %54 : vector<1x4x16x24xf32>
      %61 = vector.extract_strided_slice %60 {offsets = [0, 0, 0, 8], sizes = [1, 4, 16, 16], strides = [1, 1, 1, 1]} : vector<1x4x16x24xf32> to vector<1x4x16x16xf32>
      %62 = vector.extract_strided_slice %60 {offsets = [0, 0, 0, 0], sizes = [1, 4, 16, 8], strides = [1, 1, 1, 1]} : vector<1x4x16x24xf32> to vector<1x4x16x8xf32>
      %63 = tpu.concatenate %61, %62 in 3 : vector<1x4x16x16xf32>, vector<1x4x16x8xf32> -> vector<1x4x16x24xf32>
      %c8_i32 = arith.constant 8 : i32
      %64 = arith.andi %39, %c8_i32 : i32
      %c0_i32_83 = arith.constant 0 : i32
      %65 = arith.cmpi ne, %64, %c0_i32_83 : i32
      %66 = arith.select %65, %63, %60 : vector<1x4x16x24xf32>
      %67 = vector.extract_strided_slice %66 {offsets = [0, 0, 0, 0], sizes = [1, 4, 16, 16], strides = [1, 1, 1, 1]} : vector<1x4x16x24xf32> to vector<1x4x16x16xf32>
      %68 = arith.index_cast %arg6 : i32 to index
      %c0_84 = arith.constant 0 : index
      %c0_85 = arith.constant 0 : index
      %c0_86 = arith.constant 0 : index
      %69 = vector.load %arg4[%68, %c0_84, %c0_85, %c0_86] : memref<2x4x16x16xf32, #tpu.memory_space<vmem>>, vector<1x4x16x16xf32>
      tpu.vector_store %arg4[%68, %c0_84, %c0_85, %c0_86], %67 {strides = array<i32>} : memref<2x4x16x16xf32, #tpu.memory_space<vmem>>, vector<1x4x16x16xf32>,
    }
    %c2_i32_73 = arith.constant 2 : i32
    return
  }
  func.func @transform_0(%arg0: i32, %arg1: memref<2xi32, #tpu.memory_space<smem>>, %arg2: memref<2xi32, #tpu.memory_space<smem>>) -> (i32, i32, i32, i32) {
    %c0_i32 = arith.constant 0 : i32
    %c0_i32_0 = arith.constant 0 : i32
    %c0_i32_1 = arith.constant 0 : i32
    %c0_i32_2 = arith.constant 0 : i32
    return %arg0, %c0_i32, %c0_i32_0, %c0_i32_1 : i32, i32, i32, i32
  }
  func.func @transform_1(%arg0: i32, %arg1: memref<2xi32, #tpu.memory_space<smem>>, %arg2: memref<2xi32, #tpu.memory_space<smem>>) -> (i32, i32, i32, i32) {
    %c0_i32 = arith.constant 0 : i32
    %c0_i32_0 = arith.constant 0 : i32
    %c0_i32_1 = arith.constant 0 : i32
    %c0_i32_2 = arith.constant 0 : i32
    return %arg0, %c0_i32, %c0_i32_0, %c0_i32_1 : i32, i32, i32, i32
  }
}

</mosaic_0001>

<llo_original>
// kernel: tpu_custom_call.1
$region0: #{tpu_custom_call.1}
  #allocation0 [shape = 'u32[]', space=smem, size = 0x4, offset = 0x4, fixed_abs, tag = 'smem constant byte address 0x4 - core index']
  #allocation1 [shape = 'u32[144,128]{1,0:T(1,128)}', space=vmem, size = 0x12000, scoped, tag = 'internal scratch']
  #allocation2 [shape = 'f32[2,4,24,24]{3,2,1,0:T(8,128)}', space=vmem, size = 0x18000, scoped, tag = 'scratch operand']
  #allocation3 [shape = 's32[1]{0}', space=sflag, size = 0x4, scoped, tag = 'scoped memory for tpu_custom_call.1']
  #allocation4 [shape = 'u8[512]{0}', space=smem, size = 0x200, scoped, tag = 'prefetched SMEM operand 0']
  #allocation5 [shape = 'u8[512]{0}', space=smem, size = 0x200, scoped, tag = 'prefetched SMEM operand 1']
  %s0 = inlined_call_operand.hbm [shape: s32[2], index: 0, kind: input, shape index: {}]
  %s1 = inlined_call_operand.vmem [shape: s32[2], index: 1, kind: input, shape index: {}]
  %s2 = inlined_call_operand.hbm [shape: f32[2,4,16,16], index: 2, kind: input, shape index: {}]
  %s3 = inlined_call_operand.hbm [shape: f32[2,4,16,16], index: 3, kind: output, shape index: {}]
  %s4 = sld [smem:[#allocation0]]
  $region25: #{tpu_custom_call.1} parent=0
    _
  %s6 = ssub.s32 1, %s4
  %s7 = scalar_select 0, %s6, %s4
  %9 = dma.hbm_to_smem %s0, 16, [#allocation4], [#allocation3]
  %s10 = sshll.u32 %s1, 4
  %s11 = int_to_ptr.vmem [resolvable:$true] %s10
  %13 = dma.vmem_to_smem %s11, 16, [#allocation5], [#allocation3]
  %14 = dma.done [#allocation3], 32
  %15 = sfence
  $region1: #{tpu_custom_call.1} parent=0
    #allocation6 [shape = 'u8[65536]{0}', space=vmem, size = 0x10000, scoped, tag = 'input window, operand 2, single buffered']
    #allocation7 [shape = 's32[1]{0}', space=sflag, size = 0x4, scoped, tag = 'scoped memory for tpu_custom_call.1']
    #allocation8 [shape = 's32[1]{0}', space=sflag, size = 0x4, scoped, tag = 'scoped memory for tpu_custom_call.1']
    #allocation9 [shape = 'u8[65536]{0}', space=vmem, size = 0x10000, scoped, tag = 'output window, operand 0, single buffered']
    %16 = vsyncpa [#allocation7], 0
    %17 = vsyncpa [#allocation8], 0
    // Predicated region
    $region2: #{tpu_custom_call.1} parent=1 // pred_check
      _
    $region3: #{tpu_custom_call.1} parent=1 // pred_check_branch
      %19 = sbr.rel (0) target = $region5
    $region4: #{tpu_custom_call.1} parent=1 // pred_region
      %s21 = ssub.s32 2048, 2048
      %22 = vsyncadd [#allocation7], %s21
      %s23 = sshll.u32 [#allocation6], 4
      %s24 = int_to_ptr.vmem [resolvable:$true] %s23
      %29 = dma.hbm_to_vmem [thread:$0]  %s2, 2048, %s24, [#allocation7], 128, 128, 8
    $region5: #{tpu_custom_call.1} parent=1 // pred_fallthru
      _
    // Predicated region
    $region6: #{tpu_custom_call.1} parent=1 // pred_check
      _
    $region7: #{tpu_custom_call.1} parent=1 // pred_check_branch
      %31 = sbr.rel (0) target = $region9
    $region8: #{tpu_custom_call.1} parent=1 // pred_region
      %32 = dma.done [#allocation7], 2048
    $region9: #{tpu_custom_call.1} parent=1 // pred_fallthru
      _
    %v33 = vld [vmem:[#allocation6] sm:$0xff]
    %v34 = vld [vmem:[#allocation6 + $0x8] sm:$0xff]
    %v35 = vld [vmem:[#allocation6 + $0x10] sm:$0xff]
    %v36 = vld [vmem:[#allocation6 + $0x18] sm:$0xff]
    %v37 = vld [vmem:[#allocation6 + $0x20] sm:$0xff]
    %v38 = vld [vmem:[#allocation6 + $0x28] sm:$0xff]
    %v39 = vld [vmem:[#allocation6 + $0x30] sm:$0xff]
    %v40 = vld [vmem:[#allocation6 + $0x38] sm:$0xff]
    %v41 = vld [vmem:[#allocation6 + $0x40] sm:$0xff]
    %v42 = vld [vmem:[#allocation6 + $0x48] sm:$0xff]
    %v43 = vld [vmem:[#allocation6 + $0x50] sm:$0xff]
    %v44 = vld [vmem:[#allocation6 + $0x58] sm:$0xff]
    %v45 = vld [vmem:[#allocation6 + $0x60] sm:$0xff]
    %v46 = vld [vmem:[#allocation6 + $0x68] sm:$0xff]
    %v47 = vld [vmem:[#allocation6 + $0x70] sm:$0xff]
    %v48 = vld [vmem:[#allocation6 + $0x78] sm:$0xff]
    %65 = vrot.lane.b32.xlu0 %v33, 4
    %v66 = vpop.permute.xlu0 %65
    %67 = vrot.lane.b32.xlu0 %v34, 4
    %v68 = vpop.permute.xlu0 %67
    %69 = vrot.lane.b32.xlu0 %v35, 4
    %v70 = vpop.permute.xlu0 %69
    %71 = vrot.lane.b32.xlu0 %v36, 4
    %v72 = vpop.permute.xlu0 %71
    %73 = vrot.lane.b32.xlu0 %v37, 4
    %v74 = vpop.permute.xlu0 %73
    %75 = vrot.lane.b32.xlu0 %v38, 4
    %v76 = vpop.permute.xlu0 %75
    %77 = vrot.lane.b32.xlu0 %v39, 4
    %v78 = vpop.permute.xlu0 %77
    %79 = vrot.lane.b32.xlu0 %v40, 4
    %v80 = vpop.permute.xlu0 %79
    %81 = vrot.lane.b32.xlu0 %v41, 4
    %v82 = vpop.permute.xlu0 %81
    %83 = vrot.lane.b32.xlu0 %v42, 4
    %v84 = vpop.permute.xlu0 %83
    %85 = vrot.lane.b32.xlu0 %v43, 4
    %v86 = vpop.permute.xlu0 %85
    %87 = vrot.lane.b32.xlu0 %v44, 4
    %v88 = vpop.permute.xlu0 %87
    %89 = vrot.lane.b32.xlu0 %v45, 4
    %v90 = vpop.permute.xlu0 %89
    %91 = vrot.lane.b32.xlu0 %v46, 4
    %v92 = vpop.permute.xlu0 %91
    %93 = vrot.lane.b32.xlu0 %v47, 4
    %v94 = vpop.permute.xlu0 %93
    %95 = vrot.lane.b32.xlu0 %v48, 4
    %v96 = vpop.permute.xlu0 %95
    %vm113 = vcmask 162848
    %114 = vst.msk [vmem:[#allocation2 + $0x4] sm:$0xff] %vm113, %v66
    %115 = vst.msk [vmem:[#allocation2 + $0xc] sm:$0xff] %vm113, %v68
    %116 = vst.msk [vmem:[#allocation2 + $0x1c] sm:$0xff] %vm113, %v70
    %117 = vst.msk [vmem:[#allocation2 + $0x24] sm:$0xff] %vm113, %v72
    %118 = vst.msk [vmem:[#allocation2 + $0x34] sm:$0xff] %vm113, %v74
    %119 = vst.msk [vmem:[#allocation2 + $0x3c] sm:$0xff] %vm113, %v76
    %120 = vst.msk [vmem:[#allocation2 + $0x4c] sm:$0xff] %vm113, %v78
    %121 = vst.msk [vmem:[#allocation2 + $0x54] sm:$0xff] %vm113, %v80
    %122 = vst.msk [vmem:[#allocation2 + $0x64] sm:$0xff] %vm113, %v82
    %123 = vst.msk [vmem:[#allocation2 + $0x6c] sm:$0xff] %vm113, %v84
    %124 = vst.msk [vmem:[#allocation2 + $0x7c] sm:$0xff] %vm113, %v86
    %125 = vst.msk [vmem:[#allocation2 + $0x84] sm:$0xff] %vm113, %v88
    %126 = vst.msk [vmem:[#allocation2 + $0x94] sm:$0xff] %vm113, %v90
    %127 = vst.msk [vmem:[#allocation2 + $0x9c] sm:$0xff] %vm113, %v92
    %128 = vst.msk [vmem:[#allocation2 + $0xac] sm:$0xff] %vm113, %v94
    %129 = vst.msk [vmem:[#allocation2 + $0xb4] sm:$0xff] %vm113, %v96
    %v130 = vld [vmem:[#allocation6 + $0x1] sm:$0x1]
    %v131 = vld [vmem:[#allocation6 + $0x11] sm:$0x1]
    %v132 = vld [vmem:[#allocation6 + $0x21] sm:$0x1]
    %v133 = vld [vmem:[#allocation6 + $0x31] sm:$0x1]
    %v134 = vld [vmem:[#allocation6 + $0x41] sm:$0x1]
    %v135 = vld [vmem:[#allocation6 + $0x51] sm:$0x1]
    %v136 = vld [vmem:[#allocation6 + $0x61] sm:$0x1]
    %v137 = vld [vmem:[#allocation6 + $0x71] sm:$0x1]
    %146 = vrot.lane.b32.xlu0 %v130, 4
    %v147 = vpop.permute.xlu0 %146
    %148 = vrot.lane.b32.xlu0 %v131, 4
    %v149 = vpop.permute.xlu0 %148
    %150 = vrot.lane.b32.xlu0 %v132, 4
    %v151 = vpop.permute.xlu0 %150
    %152 = vrot.lane.b32.xlu0 %v133, 4
    %v153 = vpop.permute.xlu0 %152
    %154 = vrot.lane.b32.xlu0 %v134, 4
    %v155 = vpop.permute.xlu0 %154
    %156 = vrot.lane.b32.xlu0 %v135, 4
    %v157 = vpop.permute.xlu0 %156
    %158 = vrot.lane.b32.xlu0 %v136, 4
    %v159 = vpop.permute.xlu0 %158
    %160 = vrot.lane.b32.xlu0 %v137, 4
    %v161 = vpop.permute.xlu0 %160
    %vm170 = vcmask 155680
    %171 = vst.msk [vmem:[#allocation2 + $0x3] sm:$0x1] %vm170, %v147
    %172 = vst.msk [vmem:[#allocation2 + $0x1b] sm:$0x1] %vm170, %v149
    %173 = vst.msk [vmem:[#allocation2 + $0x33] sm:$0x1] %vm170, %v151
    %174 = vst.msk [vmem:[#allocation2 + $0x4b] sm:$0x1] %vm170, %v153
    %175 = vst.msk [vmem:[#allocation2 + $0x63] sm:$0x1] %vm170, %v155
    %176 = vst.msk [vmem:[#allocation2 + $0x7b] sm:$0x1] %vm170, %v157
    %177 = vst.msk [vmem:[#allocation2 + $0x93] sm:$0x1] %vm170, %v159
    %178 = vst.msk [vmem:[#allocation2 + $0xab] sm:$0x1] %vm170, %v161
    %v179 = vld [vmem:[#allocation6 + $0xe] sm:$0x1]
    %v180 = vld [vmem:[#allocation6 + $0x1e] sm:$0x1]
    %v181 = vld [vmem:[#allocation6 + $0x2e] sm:$0x1]
    %v182 = vld [vmem:[#allocation6 + $0x3e] sm:$0x1]
    %v183 = vld [vmem:[#allocation6 + $0x4e] sm:$0x1]
    %v184 = vld [vmem:[#allocation6 + $0x5e] sm:$0x1]
    %v185 = vld [vmem:[#allocation6 + $0x6e] sm:$0x1]
    %v186 = vld [vmem:[#allocation6 + $0x7e] sm:$0x1]
    %195 = vrot.lane.b32.xlu0 %v179, 4
    %v196 = vpop.permute.xlu0 %195
    %197 = vrot.lane.b32.xlu0 %v180, 4
    %v198 = vpop.permute.xlu0 %197
    %199 = vrot.lane.b32.xlu0 %v181, 4
    %v200 = vpop.permute.xlu0 %199
    %201 = vrot.lane.b32.xlu0 %v182, 4
    %v202 = vpop.permute.xlu0 %201
    %203 = vrot.lane.b32.xlu0 %v183, 4
    %v204 = vpop.permute.xlu0 %203
    %205 = vrot.lane.b32.xlu0 %v184, 4
    %v206 = vpop.permute.xlu0 %205
    %207 = vrot.lane.b32.xlu0 %v185, 4
    %v208 = vpop.permute.xlu0 %207
    %209 = vrot.lane.b32.xlu0 %v186, 4
    %v210 = vpop.permute.xlu0 %209
    %219 = vst.msk [vmem:[#allocation2 + $0x14] sm:$0x1] %vm170, %v196
    %220 = vst.msk [vmem:[#allocation2 + $0x2c] sm:$0x1] %vm170, %v198
    %221 = vst.msk [vmem:[#allocation2 + $0x44] sm:$0x1] %vm170, %v200
    %222 = vst.msk [vmem:[#allocation2 + $0x5c] sm:$0x1] %vm170, %v202
    %223 = vst.msk [vmem:[#allocation2 + $0x74] sm:$0x1] %vm170, %v204
    %224 = vst.msk [vmem:[#allocation2 + $0x8c] sm:$0x1] %vm170, %v206
    %225 = vst.msk [vmem:[#allocation2 + $0xa4] sm:$0x1] %vm170, %v208
    %226 = vst.msk [vmem:[#allocation2 + $0xbc] sm:$0x1] %vm170, %v210
    %v227 = vld [vmem:[#allocation6 + $0x2] sm:$0x1]
    %v228 = vld [vmem:[#allocation6 + $0x12] sm:$0x1]
    %v229 = vld [vmem:[#allocation6 + $0x22] sm:$0x1]
    %v230 = vld [vmem:[#allocation6 + $0x32] sm:$0x1]
    %v231 = vld [vmem:[#allocation6 + $0x42] sm:$0x1]
    %v232 = vld [vmem:[#allocation6 + $0x52] sm:$0x1]
    %v233 = vld [vmem:[#allocation6 + $0x62] sm:$0x1]
    %v234 = vld [vmem:[#allocation6 + $0x72] sm:$0x1]
    %243 = vrot.lane.b32.xlu0 %v227, 4
    %v244 = vpop.permute.xlu0 %243
    %245 = vrot.lane.b32.xlu0 %v228, 4
    %v246 = vpop.permute.xlu0 %245
    %247 = vrot.lane.b32.xlu0 %v229, 4
    %v248 = vpop.permute.xlu0 %247
    %249 = vrot.lane.b32.xlu0 %v230, 4
    %v250 = vpop.permute.xlu0 %249
    %251 = vrot.lane.b32.xlu0 %v231, 4
    %v252 = vpop.permute.xlu0 %251
    %253 = vrot.lane.b32.xlu0 %v232, 4
    %v254 = vpop.permute.xlu0 %253
    %255 = vrot.lane.b32.xlu0 %v233, 4
    %v256 = vpop.permute.xlu0 %255
    %257 = vrot.lane.b32.xlu0 %v234, 4
    %v258 = vpop.permute.xlu0 %257
    %267 = vst.msk [vmem:[#allocation2 + $0x2] sm:$0x1] %vm170, %v244
    %268 = vst.msk [vmem:[#allocation2 + $0x1a] sm:$0x1] %vm170, %v246
    %269 = vst.msk [vmem:[#allocation2 + $0x32] sm:$0x1] %vm170, %v248
    %270 = vst.msk [vmem:[#allocation2 + $0x4a] sm:$0x1] %vm170, %v250
    %271 = vst.msk [vmem:[#allocation2 + $0x62] sm:$0x1] %vm170, %v252
    %272 = vst.msk [vmem:[#allocation2 + $0x7a] sm:$0x1] %vm170, %v254
    %273 = vst.msk [vmem:[#allocation2 + $0x92] sm:$0x1] %vm170, %v256
    %274 = vst.msk [vmem:[#allocation2 + $0xaa] sm:$0x1] %vm170, %v258
    %v275 = vld [vmem:[#allocation6 + $0xd] sm:$0x1]
    %v276 = vld [vmem:[#allocation6 + $0x1d] sm:$0x1]
    %v277 = vld [vmem:[#allocation6 + $0x2d] sm:$0x1]
    %v278 = vld [vmem:[#allocation6 + $0x3d] sm:$0x1]
    %v279 = vld [vmem:[#allocation6 + $0x4d] sm:$0x1]
    %v280 = vld [vmem:[#allocation6 + $0x5d] sm:$0x1]
    %v281 = vld [vmem:[#allocation6 + $0x6d] sm:$0x1]
    %v282 = vld [vmem:[#allocation6 + $0x7d] sm:$0x1]
    %291 = vrot.lane.b32.xlu0 %v275, 4
    %v292 = vpop.permute.xlu0 %291
    %293 = vrot.lane.b32.xlu0 %v276, 4
    %v294 = vpop.permute.xlu0 %293
    %295 = vrot.lane.b32.xlu0 %v277, 4
    %v296 = vpop.permute.xlu0 %295
    %297 = vrot.lane.b32.xlu0 %v278, 4
    %v298 = vpop.permute.xlu0 %297
    %299 = vrot.lane.b32.xlu0 %v279, 4
    %v300 = vpop.permute.xlu0 %299
    %301 = vrot.lane.b32.xlu0 %v280, 4
    %v302 = vpop.permute.xlu0 %301
    %303 = vrot.lane.b32.xlu0 %v281, 4
    %v304 = vpop.permute.xlu0 %303
    %305 = vrot.lane.b32.xlu0 %v282, 4
    %v306 = vpop.permute.xlu0 %305
    %315 = vst.msk [vmem:[#allocation2 + $0x15] sm:$0x1] %vm170, %v292
    %316 = vst.msk [vmem:[#allocation2 + $0x2d] sm:$0x1] %vm170, %v294
    %317 = vst.msk [vmem:[#allocation2 + $0x45] sm:$0x1] %vm170, %v296
    %318 = vst.msk [vmem:[#allocation2 + $0x5d] sm:$0x1] %vm170, %v298
    %319 = vst.msk [vmem:[#allocation2 + $0x75] sm:$0x1] %vm170, %v300
    %320 = vst.msk [vmem:[#allocation2 + $0x8d] sm:$0x1] %vm170, %v302
    %321 = vst.msk [vmem:[#allocation2 + $0xa5] sm:$0x1] %vm170, %v304
    %322 = vst.msk [vmem:[#allocation2 + $0xbd] sm:$0x1] %vm170, %v306
    %v323 = vld [vmem:[#allocation6 + $0x3] sm:$0x1]
    %v324 = vld [vmem:[#allocation6 + $0x13] sm:$0x1]
    %v325 = vld [vmem:[#allocation6 + $0x23] sm:$0x1]
    %v326 = vld [vmem:[#allocation6 + $0x33] sm:$0x1]
    %v327 = vld [vmem:[#allocation6 + $0x43] sm:$0x1]
    %v328 = vld [vmem:[#allocation6 + $0x53] sm:$0x1]
    %v329 = vld [vmem:[#allocation6 + $0x63] sm:$0x1]
    %v330 = vld [vmem:[#allocation6 + $0x73] sm:$0x1]
    %339 = vrot.lane.b32.xlu0 %v323, 4
    %v340 = vpop.permute.xlu0 %339
    %341 = vrot.lane.b32.xlu0 %v324, 4
    %v342 = vpop.permute.xlu0 %341
    %343 = vrot.lane.b32.xlu0 %v325, 4
    %v344 = vpop.permute.xlu0 %343
    %345 = vrot.lane.b32.xlu0 %v326, 4
    %v346 = vpop.permute.xlu0 %345
    %347 = vrot.lane.b32.xlu0 %v327, 4
    %v348 = vpop.permute.xlu0 %347
    %349 = vrot.lane.b32.xlu0 %v328, 4
    %v350 = vpop.permute.xlu0 %349
    %351 = vrot.lane.b32.xlu0 %v329, 4
    %v352 = vpop.permute.xlu0 %351
    %353 = vrot.lane.b32.xlu0 %v330, 4
    %v354 = vpop.permute.xlu0 %353
    %363 = vst.msk [vmem:[#allocation2 + $0x1] sm:$0x1] %vm170, %v340
    %364 = vst.msk [vmem:[#allocation2 + $0x19] sm:$0x1] %vm170, %v342
    %365 = vst.msk [vmem:[#allocation2 + $0x31] sm:$0x1] %vm170, %v344
    %366 = vst.msk [vmem:[#allocation2 + $0x49] sm:$0x1] %vm170, %v346
    %367 = vst.msk [vmem:[#allocation2 + $0x61] sm:$0x1] %vm170, %v348
    %368 = vst.msk [vmem:[#allocation2 + $0x79] sm:$0x1] %vm170, %v350
    %369 = vst.msk [vmem:[#allocation2 + $0x91] sm:$0x1] %vm170, %v352
    %370 = vst.msk [vmem:[#allocation2 + $0xa9] sm:$0x1] %vm170, %v354
    %v371 = vld [vmem:[#allocation6 + $0xc] sm:$0x1]
    %v372 = vld [vmem:[#allocation6 + $0x1c] sm:$0x1]
    %v373 = vld [vmem:[#allocation6 + $0x2c] sm:$0x1]
    %v374 = vld [vmem:[#allocation6 + $0x3c] sm:$0x1]
    %v375 = vld [vmem:[#allocation6 + $0x4c] sm:$0x1]
    %v376 = vld [vmem:[#allocation6 + $0x5c] sm:$0x1]
    %v377 = vld [vmem:[#allocation6 + $0x6c] sm:$0x1]
    %v378 = vld [vmem:[#allocation6 + $0x7c] sm:$0x1]
    %387 = vrot.lane.b32.xlu0 %v371, 4
    %v388 = vpop.permute.xlu0 %387
    %389 = vrot.lane.b32.xlu0 %v372, 4
    %v390 = vpop.permute.xlu0 %389
    %391 = vrot.lane.b32.xlu0 %v373, 4
    %v392 = vpop.permute.xlu0 %391
    %393 = vrot.lane.b32.xlu0 %v374, 4
    %v394 = vpop.permute.xlu0 %393
    %395 = vrot.lane.b32.xlu0 %v375, 4
    %v396 = vpop.permute.xlu0 %395
    %397 = vrot.lane.b32.xlu0 %v376, 4
    %v398 = vpop.permute.xlu0 %397
    %399 = vrot.lane.b32.xlu0 %v377, 4
    %v400 = vpop.permute.xlu0 %399
    %401 = vrot.lane.b32.xlu0 %v378, 4
    %v402 = vpop.permute.xlu0 %401
    %411 = vst.msk [vmem:[#allocation2 + $0x16] sm:$0x1] %vm170, %v388
    %412 = vst.msk [vmem:[#allocation2 + $0x2e] sm:$0x1] %vm170, %v390
    %413 = vst.msk [vmem:[#allocation2 + $0x46] sm:$0x1] %vm170, %v392
    %414 = vst.msk [vmem:[#allocation2 + $0x5e] sm:$0x1] %vm170, %v394
    %415 = vst.msk [vmem:[#allocation2 + $0x76] sm:$0x1] %vm170, %v396
    %416 = vst.msk [vmem:[#allocation2 + $0x8e] sm:$0x1] %vm170, %v398
    %417 = vst.msk [vmem:[#allocation2 + $0xa6] sm:$0x1] %vm170, %v400
    %418 = vst.msk [vmem:[#allocation2 + $0xbe] sm:$0x1] %vm170, %v402
    %v419 = vld [vmem:[#allocation6 + $0x4] sm:$0x1]
    %v420 = vld [vmem:[#allocation6 + $0x14] sm:$0x1]
    %v421 = vld [vmem:[#allocation6 + $0x24] sm:$0x1]
    %v422 = vld [vmem:[#allocation6 + $0x34] sm:$0x1]
    %v423 = vld [vmem:[#allocation6 + $0x44] sm:$0x1]
    %v424 = vld [vmem:[#allocation6 + $0x54] sm:$0x1]
    %v425 = vld [vmem:[#allocation6 + $0x64] sm:$0x1]
    %v426 = vld [vmem:[#allocation6 + $0x74] sm:$0x1]
    %435 = vrot.lane.b32.xlu0 %v419, 4
    %v436 = vpop.permute.xlu0 %435
    %437 = vrot.lane.b32.xlu0 %v420, 4
    %v438 = vpop.permute.xlu0 %437
    %439 = vrot.lane.b32.xlu0 %v421, 4
    %v440 = vpop.permute.xlu0 %439
    %441 = vrot.lane.b32.xlu0 %v422, 4
    %v442 = vpop.permute.xlu0 %441
    %443 = vrot.lane.b32.xlu0 %v423, 4
    %v444 = vpop.permute.xlu0 %443
    %445 = vrot.lane.b32.xlu0 %v424, 4
    %v446 = vpop.permute.xlu0 %445
    %447 = vrot.lane.b32.xlu0 %v425, 4
    %v448 = vpop.permute.xlu0 %447
    %449 = vrot.lane.b32.xlu0 %v426, 4
    %v450 = vpop.permute.xlu0 %449
    %459 = vst.msk [vmem:[#allocation2] sm:$0x1] %vm170, %v436
    %460 = vst.msk [vmem:[#allocation2 + $0x18] sm:$0x1] %vm170, %v438
    %461 = vst.msk [vmem:[#allocation2 + $0x30] sm:$0x1] %vm170, %v440
    %462 = vst.msk [vmem:[#allocation2 + $0x48] sm:$0x1] %vm170, %v442
    %463 = vst.msk [vmem:[#allocation2 + $0x60] sm:$0x1] %vm170, %v444
    %464 = vst.msk [vmem:[#allocation2 + $0x78] sm:$0x1] %vm170, %v446
    %465 = vst.msk [vmem:[#allocation2 + $0x90] sm:$0x1] %vm170, %v448
    %466 = vst.msk [vmem:[#allocation2 + $0xa8] sm:$0x1] %vm170, %v450
    %v467 = vld [vmem:[#allocation6 + $0xb] sm:$0x1]
    %v468 = vld [vmem:[#allocation6 + $0x1b] sm:$0x1]
    %v469 = vld [vmem:[#allocation6 + $0x2b] sm:$0x1]
    %v470 = vld [vmem:[#allocation6 + $0x3b] sm:$0x1]
    %v471 = vld [vmem:[#allocation6 + $0x4b] sm:$0x1]
    %v472 = vld [vmem:[#allocation6 + $0x5b] sm:$0x1]
    %v473 = vld [vmem:[#allocation6 + $0x6b] sm:$0x1]
    %v474 = vld [vmem:[#allocation6 + $0x7b] sm:$0x1]
    %483 = vrot.lane.b32.xlu0 %v467, 4
    %v484 = vpop.permute.xlu0 %483
    %485 = vrot.lane.b32.xlu0 %v468, 4
    %v486 = vpop.permute.xlu0 %485
    %487 = vrot.lane.b32.xlu0 %v469, 4
    %v488 = vpop.permute.xlu0 %487
    %489 = vrot.lane.b32.xlu0 %v470, 4
    %v490 = vpop.permute.xlu0 %489
    %491 = vrot.lane.b32.xlu0 %v471, 4
    %v492 = vpop.permute.xlu0 %491
    %493 = vrot.lane.b32.xlu0 %v472, 4
    %v494 = vpop.permute.xlu0 %493
    %495 = vrot.lane.b32.xlu0 %v473, 4
    %v496 = vpop.permute.xlu0 %495
    %497 = vrot.lane.b32.xlu0 %v474, 4
    %v498 = vpop.permute.xlu0 %497
    %507 = vst.msk [vmem:[#allocation2 + $0x17] sm:$0x1] %vm170, %v484
    %508 = vst.msk [vmem:[#allocation2 + $0x2f] sm:$0x1] %vm170, %v486
    %509 = vst.msk [vmem:[#allocation2 + $0x47] sm:$0x1] %vm170, %v488
    %510 = vst.msk [vmem:[#allocation2 + $0x5f] sm:$0x1] %vm170, %v490
    %511 = vst.msk [vmem:[#allocation2 + $0x77] sm:$0x1] %vm170, %v492
    %512 = vst.msk [vmem:[#allocation2 + $0x8f] sm:$0x1] %vm170, %v494
    %513 = vst.msk [vmem:[#allocation2 + $0xa7] sm:$0x1] %vm170, %v496
    %514 = vst.msk [vmem:[#allocation2 + $0xbf] sm:$0x1] %vm170, %v498
    %v515 = vld [vmem:[#allocation2] sm:$0xff]
    %v516 = vld [vmem:[#allocation2 + $0x8] sm:$0xff]
    %v517 = vld [vmem:[#allocation2 + $0x10] sm:$0xff]
    %v518 = vld [vmem:[#allocation2 + $0x18] sm:$0xff]
    %v519 = vld [vmem:[#allocation2 + $0x20] sm:$0xff]
    %v520 = vld [vmem:[#allocation2 + $0x28] sm:$0xff]
    %v521 = vld [vmem:[#allocation2 + $0x30] sm:$0xff]
    %v522 = vld [vmem:[#allocation2 + $0x38] sm:$0xff]
    %v523 = vld [vmem:[#allocation2 + $0x40] sm:$0xff]
    %v524 = vld [vmem:[#allocation2 + $0x48] sm:$0xff]
    %v525 = vld [vmem:[#allocation2 + $0x50] sm:$0xff]
    %v526 = vld [vmem:[#allocation2 + $0x58] sm:$0xff]
    %v527 = vld [vmem:[#allocation2 + $0x60] sm:$0xff]
    %v528 = vld [vmem:[#allocation2 + $0x68] sm:$0xff]
    %v529 = vld [vmem:[#allocation2 + $0x70] sm:$0xff]
    %v530 = vld [vmem:[#allocation2 + $0x78] sm:$0xff]
    %v531 = vld [vmem:[#allocation2 + $0x80] sm:$0xff]
    %v532 = vld [vmem:[#allocation2 + $0x88] sm:$0xff]
    %v533 = vld [vmem:[#allocation2 + $0x90] sm:$0xff]
    %v534 = vld [vmem:[#allocation2 + $0x98] sm:$0xff]
    %v535 = vld [vmem:[#allocation2 + $0xa0] sm:$0xff]
    %v536 = vld [vmem:[#allocation2 + $0xa8] sm:$0xff]
    %v537 = vld [vmem:[#allocation2 + $0xb0] sm:$0xff]
    %v538 = vld [vmem:[#allocation2 + $0xb8] sm:$0xff]
    %563 = vrot.lane.b32.xlu0 %v515, 120
    %v564 = vpop.permute.xlu0 %563
    %565 = vrot.lane.b32.xlu0 %v516, 120
    %v566 = vpop.permute.xlu0 %565
    %567 = vrot.lane.b32.xlu0 %v517, 120
    %v568 = vpop.permute.xlu0 %567
    %569 = vrot.lane.b32.xlu0 %v518, 120
    %v570 = vpop.permute.xlu0 %569
    %571 = vrot.lane.b32.xlu0 %v519, 120
    %v572 = vpop.permute.xlu0 %571
    %573 = vrot.lane.b32.xlu0 %v520, 120
    %v574 = vpop.permute.xlu0 %573
    %575 = vrot.lane.b32.xlu0 %v521, 120
    %v576 = vpop.permute.xlu0 %575
    %577 = vrot.lane.b32.xlu0 %v522, 120
    %v578 = vpop.permute.xlu0 %577
    %579 = vrot.lane.b32.xlu0 %v523, 120
    %v580 = vpop.permute.xlu0 %579
    %581 = vrot.lane.b32.xlu0 %v524, 120
    %v582 = vpop.permute.xlu0 %581
    %583 = vrot.lane.b32.xlu0 %v525, 120
    %v584 = vpop.permute.xlu0 %583
    %585 = vrot.lane.b32.xlu0 %v526, 120
    %v586 = vpop.permute.xlu0 %585
    %587 = vrot.lane.b32.xlu0 %v527, 120
    %v588 = vpop.permute.xlu0 %587
    %589 = vrot.lane.b32.xlu0 %v528, 120
    %v590 = vpop.permute.xlu0 %589
    %591 = vrot.lane.b32.xlu0 %v529, 120
    %v592 = vpop.permute.xlu0 %591
    %593 = vrot.lane.b32.xlu0 %v530, 120
    %v594 = vpop.permute.xlu0 %593
    %595 = vrot.lane.b32.xlu0 %v531, 120
    %v596 = vpop.permute.xlu0 %595
    %597 = vrot.lane.b32.xlu0 %v532, 120
    %v598 = vpop.permute.xlu0 %597
    %599 = vrot.lane.b32.xlu0 %v533, 120
    %v600 = vpop.permute.xlu0 %599
    %601 = vrot.lane.b32.xlu0 %v534, 120
    %v602 = vpop.permute.xlu0 %601
    %603 = vrot.lane.b32.xlu0 %v535, 120
    %v604 = vpop.permute.xlu0 %603
    %605 = vrot.lane.b32.xlu0 %v536, 120
    %v606 = vpop.permute.xlu0 %605
    %607 = vrot.lane.b32.xlu0 %v537, 120
    %v608 = vpop.permute.xlu0 %607
    %609 = vrot.lane.b32.xlu0 %v538, 120
    %v610 = vpop.permute.xlu0 %609
    %635 = vrot.lane.b32.xlu0 %v515, 122
    %v636 = vpop.permute.xlu0 %635
    %637 = vrot.lane.b32.xlu0 %v516, 122
    %v638 = vpop.permute.xlu0 %637
    %639 = vrot.lane.b32.xlu0 %v517, 122
    %v640 = vpop.permute.xlu0 %639
    %641 = vrot.lane.b32.xlu0 %v518, 122
    %v642 = vpop.permute.xlu0 %641
    %643 = vrot.lane.b32.xlu0 %v519, 122
    %v644 = vpop.permute.xlu0 %643
    %645 = vrot.lane.b32.xlu0 %v520, 122
    %v646 = vpop.permute.xlu0 %645
    %647 = vrot.lane.b32.xlu0 %v521, 122
    %v648 = vpop.permute.xlu0 %647
    %649 = vrot.lane.b32.xlu0 %v522, 122
    %v650 = vpop.permute.xlu0 %649
    %651 = vrot.lane.b32.xlu0 %v523, 122
    %v652 = vpop.permute.xlu0 %651
    %653 = vrot.lane.b32.xlu0 %v524, 122
    %v654 = vpop.permute.xlu0 %653
    %655 = vrot.lane.b32.xlu0 %v525, 122
    %v656 = vpop.permute.xlu0 %655
    %657 = vrot.lane.b32.xlu0 %v526, 122
    %v658 = vpop.permute.xlu0 %657
    %659 = vrot.lane.b32.xlu0 %v527, 122
    %v660 = vpop.permute.xlu0 %659
    %661 = vrot.lane.b32.xlu0 %v528, 122
    %v662 = vpop.permute.xlu0 %661
    %663 = vrot.lane.b32.xlu0 %v529, 122
    %v664 = vpop.permute.xlu0 %663
    %665 = vrot.lane.b32.xlu0 %v530, 122
    %v666 = vpop.permute.xlu0 %665
    %667 = vrot.lane.b32.xlu0 %v531, 122
    %v668 = vpop.permute.xlu0 %667
    %669 = vrot.lane.b32.xlu0 %v532, 122
    %v670 = vpop.permute.xlu0 %669
    %671 = vrot.lane.b32.xlu0 %v533, 122
    %v672 = vpop.permute.xlu0 %671
    %673 = vrot.lane.b32.xlu0 %v534, 122
    %v674 = vpop.permute.xlu0 %673
    %675 = vrot.lane.b32.xlu0 %v535, 122
    %v676 = vpop.permute.xlu0 %675
    %677 = vrot.lane.b32.xlu0 %v536, 122
    %v678 = vpop.permute.xlu0 %677
    %679 = vrot.lane.b32.xlu0 %v537, 122
    %v680 = vpop.permute.xlu0 %679
    %681 = vrot.lane.b32.xlu0 %v538, 122
    %v682 = vpop.permute.xlu0 %681
    %707 = vrot.lane.b32.xlu0 %v515, 124
    %v708 = vpop.permute.xlu0 %707
    %709 = vrot.lane.b32.xlu0 %v516, 124
    %v710 = vpop.permute.xlu0 %709
    %711 = vrot.lane.b32.xlu0 %v517, 124
    %v712 = vpop.permute.xlu0 %711
    %713 = vrot.lane.b32.xlu0 %v518, 124
    %v714 = vpop.permute.xlu0 %713
    %715 = vrot.lane.b32.xlu0 %v519, 124
    %v716 = vpop.permute.xlu0 %715
    %717 = vrot.lane.b32.xlu0 %v520, 124
    %v718 = vpop.permute.xlu0 %717
    %719 = vrot.lane.b32.xlu0 %v521, 124
    %v720 = vpop.permute.xlu0 %719
    %721 = vrot.lane.b32.xlu0 %v522, 124
    %v722 = vpop.permute.xlu0 %721
    %723 = vrot.lane.b32.xlu0 %v523, 124
    %v724 = vpop.permute.xlu0 %723
    %725 = vrot.lane.b32.xlu0 %v524, 124
    %v726 = vpop.permute.xlu0 %725
    %727 = vrot.lane.b32.xlu0 %v525, 124
    %v728 = vpop.permute.xlu0 %727
    %729 = vrot.lane.b32.xlu0 %v526, 124
    %v730 = vpop.permute.xlu0 %729
    %731 = vrot.lane.b32.xlu0 %v527, 124
    %v732 = vpop.permute.xlu0 %731
    %733 = vrot.lane.b32.xlu0 %v528, 124
    %v734 = vpop.permute.xlu0 %733
    %735 = vrot.lane.b32.xlu0 %v529, 124
    %v736 = vpop.permute.xlu0 %735
    %737 = vrot.lane.b32.xlu0 %v530, 124
    %v738 = vpop.permute.xlu0 %737
    %739 = vrot.lane.b32.xlu0 %v531, 124
    %v740 = vpop.permute.xlu0 %739
    %741 = vrot.lane.b32.xlu0 %v532, 124
    %v742 = vpop.permute.xlu0 %741
    %743 = vrot.lane.b32.xlu0 %v533, 124
    %v744 = vpop.permute.xlu0 %743
    %745 = vrot.lane.b32.xlu0 %v534, 124
    %v746 = vpop.permute.xlu0 %745
    %747 = vrot.lane.b32.xlu0 %v535, 124
    %v748 = vpop.permute.xlu0 %747
    %749 = vrot.lane.b32.xlu0 %v536, 124
    %v750 = vpop.permute.xlu0 %749
    %751 = vrot.lane.b32.xlu0 %v537, 124
    %v752 = vpop.permute.xlu0 %751
    %753 = vrot.lane.b32.xlu0 %v538, 124
    %v754 = vpop.permute.xlu0 %753
    %779 = vrot.lane.b32.xlu0 %v515, 126
    %v780 = vpop.permute.xlu0 %779
    %781 = vrot.lane.b32.xlu0 %v516, 126
    %v782 = vpop.permute.xlu0 %781
    %783 = vrot.lane.b32.xlu0 %v517, 126
    %v784 = vpop.permute.xlu0 %783
    %785 = vrot.lane.b32.xlu0 %v518, 126
    %v786 = vpop.permute.xlu0 %785
    %787 = vrot.lane.b32.xlu0 %v519, 126
    %v788 = vpop.permute.xlu0 %787
    %789 = vrot.lane.b32.xlu0 %v520, 126
    %v790 = vpop.permute.xlu0 %789
    %791 = vrot.lane.b32.xlu0 %v521, 126
    %v792 = vpop.permute.xlu0 %791
    %793 = vrot.lane.b32.xlu0 %v522, 126
    %v794 = vpop.permute.xlu0 %793
    %795 = vrot.lane.b32.xlu0 %v523, 126
    %v796 = vpop.permute.xlu0 %795
    %797 = vrot.lane.b32.xlu0 %v524, 126
    %v798 = vpop.permute.xlu0 %797
    %799 = vrot.lane.b32.xlu0 %v525, 126
    %v800 = vpop.permute.xlu0 %799
    %801 = vrot.lane.b32.xlu0 %v526, 126
    %v802 = vpop.permute.xlu0 %801
    %803 = vrot.lane.b32.xlu0 %v527, 126
    %v804 = vpop.permute.xlu0 %803
    %805 = vrot.lane.b32.xlu0 %v528, 126
    %v806 = vpop.permute.xlu0 %805
    %807 = vrot.lane.b32.xlu0 %v529, 126
    %v808 = vpop.permute.xlu0 %807
    %809 = vrot.lane.b32.xlu0 %v530, 126
    %v810 = vpop.permute.xlu0 %809
    %811 = vrot.lane.b32.xlu0 %v531, 126
    %v812 = vpop.permute.xlu0 %811
    %813 = vrot.lane.b32.xlu0 %v532, 126
    %v814 = vpop.permute.xlu0 %813
    %815 = vrot.lane.b32.xlu0 %v533, 126
    %v816 = vpop.permute.xlu0 %815
    %817 = vrot.lane.b32.xlu0 %v534, 126
    %v818 = vpop.permute.xlu0 %817
    %819 = vrot.lane.b32.xlu0 %v535, 126
    %v820 = vpop.permute.xlu0 %819
    %821 = vrot.lane.b32.xlu0 %v536, 126
    %v822 = vpop.permute.xlu0 %821
    %823 = vrot.lane.b32.xlu0 %v537, 126
    %v824 = vpop.permute.xlu0 %823
    %825 = vrot.lane.b32.xlu0 %v538, 126
    %v826 = vpop.permute.xlu0 %825
    %vm851 = vcmask 7168
    %v852 = vsel %vm851, %v564, %v636
    %v853 = vsel %vm851, %v566, %v638
    %v854 = vsel %vm851, %v568, %v640
    %v855 = vsel %vm851, %v570, %v642
    %v856 = vsel %vm851, %v572, %v644
    %v857 = vsel %vm851, %v574, %v646
    %v858 = vsel %vm851, %v576, %v648
    %v859 = vsel %vm851, %v578, %v650
    %v860 = vsel %vm851, %v580, %v652
    %v861 = vsel %vm851, %v582, %v654
    %v862 = vsel %vm851, %v584, %v656
    %v863 = vsel %vm851, %v586, %v658
    %v864 = vsel %vm851, %v588, %v660
    %v865 = vsel %vm851, %v590, %v662
    %v866 = vsel %vm851, %v592, %v664
    %v867 = vsel %vm851, %v594, %v666
    %v868 = vsel %vm851, %v596, %v668
    %v869 = vsel %vm851, %v598, %v670
    %v870 = vsel %vm851, %v600, %v672
    %v871 = vsel %vm851, %v602, %v674
    %v872 = vsel %vm851, %v604, %v676
    %v873 = vsel %vm851, %v606, %v678
    %v874 = vsel %vm851, %v608, %v680
    %v875 = vsel %vm851, %v610, %v682
    %vm876 = vcmask 15360
    %v877 = vsel %vm876, %v852, %v708
    %v878 = vsel %vm876, %v853, %v710
    %v879 = vsel %vm876, %v854, %v712
    %v880 = vsel %vm876, %v855, %v714
    %v881 = vsel %vm876, %v856, %v716
    %v882 = vsel %vm876, %v857, %v718
    %v883 = vsel %vm876, %v858, %v720
    %v884 = vsel %vm876, %v859, %v722
    %v885 = vsel %vm876, %v860, %v724
    %v886 = vsel %vm876, %v861, %v726
    %v887 = vsel %vm876, %v862, %v728
    %v888 = vsel %vm876, %v863, %v730
    %v889 = vsel %vm876, %v864, %v732
    %v890 = vsel %vm876, %v865, %v734
    %v891 = vsel %vm876, %v866, %v736
    %v892 = vsel %vm876, %v867, %v738
    %v893 = vsel %vm876, %v868, %v740
    %v894 = vsel %vm876, %v869, %v742
    %v895 = vsel %vm876, %v870, %v744
    %v896 = vsel %vm876, %v871, %v746
    %v897 = vsel %vm876, %v872, %v748
    %v898 = vsel %vm876, %v873, %v750
    %v899 = vsel %vm876, %v874, %v752
    %v900 = vsel %vm876, %v875, %v754
    %vm901 = vcmask 23552
    %v902 = vsel %vm901, %v877, %v780
    %v903 = vsel %vm901, %v878, %v782
    %v904 = vsel %vm901, %v879, %v784
    %v905 = vsel %vm901, %v880, %v786
    %v906 = vsel %vm901, %v881, %v788
    %v907 = vsel %vm901, %v882, %v790
    %v908 = vsel %vm901, %v883, %v792
    %v909 = vsel %vm901, %v884, %v794
    %v910 = vsel %vm901, %v885, %v796
    %v911 = vsel %vm901, %v886, %v798
    %v912 = vsel %vm901, %v887, %v800
    %v913 = vsel %vm901, %v888, %v802
    %v914 = vsel %vm901, %v889, %v804
    %v915 = vsel %vm901, %v890, %v806
    %v916 = vsel %vm901, %v891, %v808
    %v917 = vsel %vm901, %v892, %v810
    %v918 = vsel %vm901, %v893, %v812
    %v919 = vsel %vm901, %v894, %v814
    %v920 = vsel %vm901, %v895, %v816
    %v921 = vsel %vm901, %v896, %v818
    %v922 = vsel %vm901, %v897, %v820
    %v923 = vsel %vm901, %v898, %v822
    %v924 = vsel %vm901, %v899, %v824
    %v925 = vsel %vm901, %v900, %v826
    %vm926 = vcmask 31744
    %927 = vst.msk [vmem:[#allocation2] sm:$0xff] %vm926, %v902
    %928 = vst.msk [vmem:[#allocation2 + $0x8] sm:$0xff] %vm926, %v903
    %929 = vst.msk [vmem:[#allocation2 + $0x10] sm:$0xff] %vm926, %v904
    %930 = vst.msk [vmem:[#allocation2 + $0x18] sm:$0xff] %vm926, %v905
    %931 = vst.msk [vmem:[#allocation2 + $0x20] sm:$0xff] %vm926, %v906
    %932 = vst.msk [vmem:[#allocation2 + $0x28] sm:$0xff] %vm926, %v907
    %933 = vst.msk [vmem:[#allocation2 + $0x30] sm:$0xff] %vm926, %v908
    %934 = vst.msk [vmem:[#allocation2 + $0x38] sm:$0xff] %vm926, %v909
    %935 = vst.msk [vmem:[#allocation2 + $0x40] sm:$0xff] %vm926, %v910
    %936 = vst.msk [vmem:[#allocation2 + $0x48] sm:$0xff] %vm926, %v911
    %937 = vst.msk [vmem:[#allocation2 + $0x50] sm:$0xff] %vm926, %v912
    %938 = vst.msk [vmem:[#allocation2 + $0x58] sm:$0xff] %vm926, %v913
    %939 = vst.msk [vmem:[#allocation2 + $0x60] sm:$0xff] %vm926, %v914
    %940 = vst.msk [vmem:[#allocation2 + $0x68] sm:$0xff] %vm926, %v915
    %941 = vst.msk [vmem:[#allocation2 + $0x70] sm:$0xff] %vm926, %v916
    %942 = vst.msk [vmem:[#allocation2 + $0x78] sm:$0xff] %vm926, %v917
    %943 = vst.msk [vmem:[#allocation2 + $0x80] sm:$0xff] %vm926, %v918
    %944 = vst.msk [vmem:[#allocation2 + $0x88] sm:$0xff] %vm926, %v919
    %945 = vst.msk [vmem:[#allocation2 + $0x90] sm:$0xff] %vm926, %v920
    %946 = vst.msk [vmem:[#allocation2 + $0x98] sm:$0xff] %vm926, %v921
    %947 = vst.msk [vmem:[#allocation2 + $0xa0] sm:$0xff] %vm926, %v922
    %948 = vst.msk [vmem:[#allocation2 + $0xa8] sm:$0xff] %vm926, %v923
    %949 = vst.msk [vmem:[#allocation2 + $0xb0] sm:$0xff] %vm926, %v924
    %950 = vst.msk [vmem:[#allocation2 + $0xb8] sm:$0xff] %vm926, %v925
    %v951 = vld [vmem:[#allocation2] sm:$0xff]
    %v952 = vld [vmem:[#allocation2 + $0x8] sm:$0xff]
    %v953 = vld [vmem:[#allocation2 + $0x10] sm:$0xff]
    %v954 = vld [vmem:[#allocation2 + $0x18] sm:$0xff]
    %v955 = vld [vmem:[#allocation2 + $0x20] sm:$0xff]
    %v956 = vld [vmem:[#allocation2 + $0x28] sm:$0xff]
    %v957 = vld [vmem:[#allocation2 + $0x30] sm:$0xff]
    %v958 = vld [vmem:[#allocation2 + $0x38] sm:$0xff]
    %v959 = vld [vmem:[#allocation2 + $0x40] sm:$0xff]
    %v960 = vld [vmem:[#allocation2 + $0x48] sm:$0xff]
    %v961 = vld [vmem:[#allocation2 + $0x50] sm:$0xff]
    %v962 = vld [vmem:[#allocation2 + $0x58] sm:$0xff]
    %v963 = vld [vmem:[#allocation2 + $0x60] sm:$0xff]
    %v964 = vld [vmem:[#allocation2 + $0x68] sm:$0xff]
    %v965 = vld [vmem:[#allocation2 + $0x70] sm:$0xff]
    %v966 = vld [vmem:[#allocation2 + $0x78] sm:$0xff]
    %v967 = vld [vmem:[#allocation2 + $0x80] sm:$0xff]
    %v968 = vld [vmem:[#allocation2 + $0x88] sm:$0xff]
    %v969 = vld [vmem:[#allocation2 + $0x90] sm:$0xff]
    %v970 = vld [vmem:[#allocation2 + $0x98] sm:$0xff]
    %v971 = vld [vmem:[#allocation2 + $0xa0] sm:$0xff]
    %v972 = vld [vmem:[#allocation2 + $0xa8] sm:$0xff]
    %v973 = vld [vmem:[#allocation2 + $0xb0] sm:$0xff]
    %v974 = vld [vmem:[#allocation2 + $0xb8] sm:$0xff]
    %999 = vrot.lane.b32.xlu0 %v951, 110
    %v1000 = vpop.permute.xlu0 %999
    %1001 = vrot.lane.b32.xlu0 %v952, 110
    %v1002 = vpop.permute.xlu0 %1001
    %1003 = vrot.lane.b32.xlu0 %v953, 110
    %v1004 = vpop.permute.xlu0 %1003
    %1005 = vrot.lane.b32.xlu0 %v954, 110
    %v1006 = vpop.permute.xlu0 %1005
    %1007 = vrot.lane.b32.xlu0 %v955, 110
    %v1008 = vpop.permute.xlu0 %1007
    %1009 = vrot.lane.b32.xlu0 %v956, 110
    %v1010 = vpop.permute.xlu0 %1009
    %1011 = vrot.lane.b32.xlu0 %v957, 110
    %v1012 = vpop.permute.xlu0 %1011
    %1013 = vrot.lane.b32.xlu0 %v958, 110
    %v1014 = vpop.permute.xlu0 %1013
    %1015 = vrot.lane.b32.xlu0 %v959, 110
    %v1016 = vpop.permute.xlu0 %1015
    %1017 = vrot.lane.b32.xlu0 %v960, 110
    %v1018 = vpop.permute.xlu0 %1017
    %1019 = vrot.lane.b32.xlu0 %v961, 110
    %v1020 = vpop.permute.xlu0 %1019
    %1021 = vrot.lane.b32.xlu0 %v962, 110
    %v1022 = vpop.permute.xlu0 %1021
    %1023 = vrot.lane.b32.xlu0 %v963, 110
    %v1024 = vpop.permute.xlu0 %1023
    %1025 = vrot.lane.b32.xlu0 %v964, 110
    %v1026 = vpop.permute.xlu0 %1025
    %1027 = vrot.lane.b32.xlu0 %v965, 110
    %v1028 = vpop.permute.xlu0 %1027
    %1029 = vrot.lane.b32.xlu0 %v966, 110
    %v1030 = vpop.permute.xlu0 %1029
    %1031 = vrot.lane.b32.xlu0 %v967, 110
    %v1032 = vpop.permute.xlu0 %1031
    %1033 = vrot.lane.b32.xlu0 %v968, 110
    %v1034 = vpop.permute.xlu0 %1033
    %1035 = vrot.lane.b32.xlu0 %v969, 110
    %v1036 = vpop.permute.xlu0 %1035
    %1037 = vrot.lane.b32.xlu0 %v970, 110
    %v1038 = vpop.permute.xlu0 %1037
    %1039 = vrot.lane.b32.xlu0 %v971, 110
    %v1040 = vpop.permute.xlu0 %1039
    %1041 = vrot.lane.b32.xlu0 %v972, 110
    %v1042 = vpop.permute.xlu0 %1041
    %1043 = vrot.lane.b32.xlu0 %v973, 110
    %v1044 = vpop.permute.xlu0 %1043
    %1045 = vrot.lane.b32.xlu0 %v974, 110
    %v1046 = vpop.permute.xlu0 %1045
    %1071 = vrot.lane.b32.xlu0 %v951, 112
    %v1072 = vpop.permute.xlu0 %1071
    %1073 = vrot.lane.b32.xlu0 %v952, 112
    %v1074 = vpop.permute.xlu0 %1073
    %1075 = vrot.lane.b32.xlu0 %v953, 112
    %v1076 = vpop.permute.xlu0 %1075
    %1077 = vrot.lane.b32.xlu0 %v954, 112
    %v1078 = vpop.permute.xlu0 %1077
    %1079 = vrot.lane.b32.xlu0 %v955, 112
    %v1080 = vpop.permute.xlu0 %1079
    %1081 = vrot.lane.b32.xlu0 %v956, 112
    %v1082 = vpop.permute.xlu0 %1081
    %1083 = vrot.lane.b32.xlu0 %v957, 112
    %v1084 = vpop.permute.xlu0 %1083
    %1085 = vrot.lane.b32.xlu0 %v958, 112
    %v1086 = vpop.permute.xlu0 %1085
    %1087 = vrot.lane.b32.xlu0 %v959, 112
    %v1088 = vpop.permute.xlu0 %1087
    %1089 = vrot.lane.b32.xlu0 %v960, 112
    %v1090 = vpop.permute.xlu0 %1089
    %1091 = vrot.lane.b32.xlu0 %v961, 112
    %v1092 = vpop.permute.xlu0 %1091
    %1093 = vrot.lane.b32.xlu0 %v962, 112
    %v1094 = vpop.permute.xlu0 %1093
    %1095 = vrot.lane.b32.xlu0 %v963, 112
    %v1096 = vpop.permute.xlu0 %1095
    %1097 = vrot.lane.b32.xlu0 %v964, 112
    %v1098 = vpop.permute.xlu0 %1097
    %1099 = vrot.lane.b32.xlu0 %v965, 112
    %v1100 = vpop.permute.xlu0 %1099
    %1101 = vrot.lane.b32.xlu0 %v966, 112
    %v1102 = vpop.permute.xlu0 %1101
    %1103 = vrot.lane.b32.xlu0 %v967, 112
    %v1104 = vpop.permute.xlu0 %1103
    %1105 = vrot.lane.b32.xlu0 %v968, 112
    %v1106 = vpop.permute.xlu0 %1105
    %1107 = vrot.lane.b32.xlu0 %v969, 112
    %v1108 = vpop.permute.xlu0 %1107
    %1109 = vrot.lane.b32.xlu0 %v970, 112
    %v1110 = vpop.permute.xlu0 %1109
    %1111 = vrot.lane.b32.xlu0 %v971, 112
    %v1112 = vpop.permute.xlu0 %1111
    %1113 = vrot.lane.b32.xlu0 %v972, 112
    %v1114 = vpop.permute.xlu0 %1113
    %1115 = vrot.lane.b32.xlu0 %v973, 112
    %v1116 = vpop.permute.xlu0 %1115
    %1117 = vrot.lane.b32.xlu0 %v974, 112
    %v1118 = vpop.permute.xlu0 %1117
    %1143 = vrot.lane.b32.xlu0 %v951, 114
    %v1144 = vpop.permute.xlu0 %1143
    %1145 = vrot.lane.b32.xlu0 %v952, 114
    %v1146 = vpop.permute.xlu0 %1145
    %1147 = vrot.lane.b32.xlu0 %v953, 114
    %v1148 = vpop.permute.xlu0 %1147
    %1149 = vrot.lane.b32.xlu0 %v954, 114
    %v1150 = vpop.permute.xlu0 %1149
    %1151 = vrot.lane.b32.xlu0 %v955, 114
    %v1152 = vpop.permute.xlu0 %1151
    %1153 = vrot.lane.b32.xlu0 %v956, 114
    %v1154 = vpop.permute.xlu0 %1153
    %1155 = vrot.lane.b32.xlu0 %v957, 114
    %v1156 = vpop.permute.xlu0 %1155
    %1157 = vrot.lane.b32.xlu0 %v958, 114
    %v1158 = vpop.permute.xlu0 %1157
    %1159 = vrot.lane.b32.xlu0 %v959, 114
    %v1160 = vpop.permute.xlu0 %1159
    %1161 = vrot.lane.b32.xlu0 %v960, 114
    %v1162 = vpop.permute.xlu0 %1161
    %1163 = vrot.lane.b32.xlu0 %v961, 114
    %v1164 = vpop.permute.xlu0 %1163
    %1165 = vrot.lane.b32.xlu0 %v962, 114
    %v1166 = vpop.permute.xlu0 %1165
    %1167 = vrot.lane.b32.xlu0 %v963, 114
    %v1168 = vpop.permute.xlu0 %1167
    %1169 = vrot.lane.b32.xlu0 %v964, 114
    %v1170 = vpop.permute.xlu0 %1169
    %1171 = vrot.lane.b32.xlu0 %v965, 114
    %v1172 = vpop.permute.xlu0 %1171
    %1173 = vrot.lane.b32.xlu0 %v966, 114
    %v1174 = vpop.permute.xlu0 %1173
    %1175 = vrot.lane.b32.xlu0 %v967, 114
    %v1176 = vpop.permute.xlu0 %1175
    %1177 = vrot.lane.b32.xlu0 %v968, 114
    %v1178 = vpop.permute.xlu0 %1177
    %1179 = vrot.lane.b32.xlu0 %v969, 114
    %v1180 = vpop.permute.xlu0 %1179
    %1181 = vrot.lane.b32.xlu0 %v970, 114
    %v1182 = vpop.permute.xlu0 %1181
    %1183 = vrot.lane.b32.xlu0 %v971, 114
    %v1184 = vpop.permute.xlu0 %1183
    %1185 = vrot.lane.b32.xlu0 %v972, 114
    %v1186 = vpop.permute.xlu0 %1185
    %1187 = vrot.lane.b32.xlu0 %v973, 114
    %v1188 = vpop.permute.xlu0 %1187
    %1189 = vrot.lane.b32.xlu0 %v974, 114
    %v1190 = vpop.permute.xlu0 %1189
    %1215 = vrot.lane.b32.xlu0 %v951, 116
    %v1216 = vpop.permute.xlu0 %1215
    %1217 = vrot.lane.b32.xlu0 %v952, 116
    %v1218 = vpop.permute.xlu0 %1217
    %1219 = vrot.lane.b32.xlu0 %v953, 116
    %v1220 = vpop.permute.xlu0 %1219
    %1221 = vrot.lane.b32.xlu0 %v954, 116
    %v1222 = vpop.permute.xlu0 %1221
    %1223 = vrot.lane.b32.xlu0 %v955, 116
    %v1224 = vpop.permute.xlu0 %1223
    %1225 = vrot.lane.b32.xlu0 %v956, 116
    %v1226 = vpop.permute.xlu0 %1225
    %1227 = vrot.lane.b32.xlu0 %v957, 116
    %v1228 = vpop.permute.xlu0 %1227
    %1229 = vrot.lane.b32.xlu0 %v958, 116
    %v1230 = vpop.permute.xlu0 %1229
    %1231 = vrot.lane.b32.xlu0 %v959, 116
    %v1232 = vpop.permute.xlu0 %1231
    %1233 = vrot.lane.b32.xlu0 %v960, 116
    %v1234 = vpop.permute.xlu0 %1233
    %1235 = vrot.lane.b32.xlu0 %v961, 116
    %v1236 = vpop.permute.xlu0 %1235
    %1237 = vrot.lane.b32.xlu0 %v962, 116
    %v1238 = vpop.permute.xlu0 %1237
    %1239 = vrot.lane.b32.xlu0 %v963, 116
    %v1240 = vpop.permute.xlu0 %1239
    %1241 = vrot.lane.b32.xlu0 %v964, 116
    %v1242 = vpop.permute.xlu0 %1241
    %1243 = vrot.lane.b32.xlu0 %v965, 116
    %v1244 = vpop.permute.xlu0 %1243
    %1245 = vrot.lane.b32.xlu0 %v966, 116
    %v1246 = vpop.permute.xlu0 %1245
    %1247 = vrot.lane.b32.xlu0 %v967, 116
    %v1248 = vpop.permute.xlu0 %1247
    %1249 = vrot.lane.b32.xlu0 %v968, 116
    %v1250 = vpop.permute.xlu0 %1249
    %1251 = vrot.lane.b32.xlu0 %v969, 116
    %v1252 = vpop.permute.xlu0 %1251
    %1253 = vrot.lane.b32.xlu0 %v970, 116
    %v1254 = vpop.permute.xlu0 %1253
    %1255 = vrot.lane.b32.xlu0 %v971, 116
    %v1256 = vpop.permute.xlu0 %1255
    %1257 = vrot.lane.b32.xlu0 %v972, 116
    %v1258 = vpop.permute.xlu0 %1257
    %1259 = vrot.lane.b32.xlu0 %v973, 116
    %v1260 = vpop.permute.xlu0 %1259
    %1261 = vrot.lane.b32.xlu0 %v974, 116
    %v1262 = vpop.permute.xlu0 %1261
    %v1287 = vsel %vm851, %v1000, %v1072
    %v1288 = vsel %vm851, %v1002, %v1074
    %v1289 = vsel %vm851, %v1004, %v1076
    %v1290 = vsel %vm851, %v1006, %v1078
    %v1291 = vsel %vm851, %v1008, %v1080
    %v1292 = vsel %vm851, %v1010, %v1082
    %v1293 = vsel %vm851, %v1012, %v1084
    %v1294 = vsel %vm851, %v1014, %v1086
    %v1295 = vsel %vm851, %v1016, %v1088
    %v1296 = vsel %vm851, %v1018, %v1090
    %v1297 = vsel %vm851, %v1020, %v1092
    %v1298 = vsel %vm851, %v1022, %v1094
    %v1299 = vsel %vm851, %v1024, %v1096
    %v1300 = vsel %vm851, %v1026, %v1098
    %v1301 = vsel %vm851, %v1028, %v1100
    %v1302 = vsel %vm851, %v1030, %v1102
    %v1303 = vsel %vm851, %v1032, %v1104
    %v1304 = vsel %vm851, %v1034, %v1106
    %v1305 = vsel %vm851, %v1036, %v1108
    %v1306 = vsel %vm851, %v1038, %v1110
    %v1307 = vsel %vm851, %v1040, %v1112
    %v1308 = vsel %vm851, %v1042, %v1114
    %v1309 = vsel %vm851, %v1044, %v1116
    %v1310 = vsel %vm851, %v1046, %v1118
    %v1311 = vsel %vm876, %v1287, %v1144
    %v1312 = vsel %vm876, %v1288, %v1146
    %v1313 = vsel %vm876, %v1289, %v1148
    %v1314 = vsel %vm876, %v1290, %v1150
    %v1315 = vsel %vm876, %v1291, %v1152
    %v1316 = vsel %vm876, %v1292, %v1154
    %v1317 = vsel %vm876, %v1293, %v1156
    %v1318 = vsel %vm876, %v1294, %v1158
    %v1319 = vsel %vm876, %v1295, %v1160
    %v1320 = vsel %vm876, %v1296, %v1162
    %v1321 = vsel %vm876, %v1297, %v1164
    %v1322 = vsel %vm876, %v1298, %v1166
    %v1323 = vsel %vm876, %v1299, %v1168
    %v1324 = vsel %vm876, %v1300, %v1170
    %v1325 = vsel %vm876, %v1301, %v1172
    %v1326 = vsel %vm876, %v1302, %v1174
    %v1327 = vsel %vm876, %v1303, %v1176
    %v1328 = vsel %vm876, %v1304, %v1178
    %v1329 = vsel %vm876, %v1305, %v1180
    %v1330 = vsel %vm876, %v1306, %v1182
    %v1331 = vsel %vm876, %v1307, %v1184
    %v1332 = vsel %vm876, %v1308, %v1186
    %v1333 = vsel %vm876, %v1309, %v1188
    %v1334 = vsel %vm876, %v1310, %v1190
    %v1335 = vsel %vm901, %v1311, %v1216
    %v1336 = vsel %vm901, %v1312, %v1218
    %v1337 = vsel %vm901, %v1313, %v1220
    %v1338 = vsel %vm901, %v1314, %v1222
    %v1339 = vsel %vm901, %v1315, %v1224
    %v1340 = vsel %vm901, %v1316, %v1226
    %v1341 = vsel %vm901, %v1317, %v1228
    %v1342 = vsel %vm901, %v1318, %v1230
    %v1343 = vsel %vm901, %v1319, %v1232
    %v1344 = vsel %vm901, %v1320, %v1234
    %v1345 = vsel %vm901, %v1321, %v1236
    %v1346 = vsel %vm901, %v1322, %v1238
    %v1347 = vsel %vm901, %v1323, %v1240
    %v1348 = vsel %vm901, %v1324, %v1242
    %v1349 = vsel %vm901, %v1325, %v1244
    %v1350 = vsel %vm901, %v1326, %v1246
    %v1351 = vsel %vm901, %v1327, %v1248
    %v1352 = vsel %vm901, %v1328, %v1250
    %v1353 = vsel %vm901, %v1329, %v1252
    %v1354 = vsel %vm901, %v1330, %v1254
    %v1355 = vsel %vm901, %v1331, %v1256
    %v1356 = vsel %vm901, %v1332, %v1258
    %v1357 = vsel %vm901, %v1333, %v1260
    %v1358 = vsel %vm901, %v1334, %v1262
    %1383 = vrot.lane.b32.xlu0 %v1335, 20
    %v1384 = vpop.permute.xlu0 %1383
    %1385 = vrot.lane.b32.xlu0 %v1336, 20
    %v1386 = vpop.permute.xlu0 %1385
    %1387 = vrot.lane.b32.xlu0 %v1337, 20
    %v1388 = vpop.permute.xlu0 %1387
    %1389 = vrot.lane.b32.xlu0 %v1338, 20
    %v1390 = vpop.permute.xlu0 %1389
    %1391 = vrot.lane.b32.xlu0 %v1339, 20
    %v1392 = vpop.permute.xlu0 %1391
    %1393 = vrot.lane.b32.xlu0 %v1340, 20
    %v1394 = vpop.permute.xlu0 %1393
    %1395 = vrot.lane.b32.xlu0 %v1341, 20
    %v1396 = vpop.permute.xlu0 %1395
    %1397 = vrot.lane.b32.xlu0 %v1342, 20
    %v1398 = vpop.permute.xlu0 %1397
    %1399 = vrot.lane.b32.xlu0 %v1343, 20
    %v1400 = vpop.permute.xlu0 %1399
    %1401 = vrot.lane.b32.xlu0 %v1344, 20
    %v1402 = vpop.permute.xlu0 %1401
    %1403 = vrot.lane.b32.xlu0 %v1345, 20
    %v1404 = vpop.permute.xlu0 %1403
    %1405 = vrot.lane.b32.xlu0 %v1346, 20
    %v1406 = vpop.permute.xlu0 %1405
    %1407 = vrot.lane.b32.xlu0 %v1347, 20
    %v1408 = vpop.permute.xlu0 %1407
    %1409 = vrot.lane.b32.xlu0 %v1348, 20
    %v1410 = vpop.permute.xlu0 %1409
    %1411 = vrot.lane.b32.xlu0 %v1349, 20
    %v1412 = vpop.permute.xlu0 %1411
    %1413 = vrot.lane.b32.xlu0 %v1350, 20
    %v1414 = vpop.permute.xlu0 %1413
    %1415 = vrot.lane.b32.xlu0 %v1351, 20
    %v1416 = vpop.permute.xlu0 %1415
    %1417 = vrot.lane.b32.xlu0 %v1352, 20
    %v1418 = vpop.permute.xlu0 %1417
    %1419 = vrot.lane.b32.xlu0 %v1353, 20
    %v1420 = vpop.permute.xlu0 %1419
    %1421 = vrot.lane.b32.xlu0 %v1354, 20
    %v1422 = vpop.permute.xlu0 %1421
    %1423 = vrot.lane.b32.xlu0 %v1355, 20
    %v1424 = vpop.permute.xlu0 %1423
    %1425 = vrot.lane.b32.xlu0 %v1356, 20
    %v1426 = vpop.permute.xlu0 %1425
    %1427 = vrot.lane.b32.xlu0 %v1357, 20
    %v1428 = vpop.permute.xlu0 %1427
    %1429 = vrot.lane.b32.xlu0 %v1358, 20
    %v1430 = vpop.permute.xlu0 %1429
    %vm1455 = vcmask 195744
    %1456 = vst.msk [vmem:[#allocation2] sm:$0xff] %vm1455, %v1384
    %1457 = vst.msk [vmem:[#allocation2 + $0x8] sm:$0xff] %vm1455, %v1386
    %1458 = vst.msk [vmem:[#allocation2 + $0x10] sm:$0xff] %vm1455, %v1388
    %1459 = vst.msk [vmem:[#allocation2 + $0x18] sm:$0xff] %vm1455, %v1390
    %1460 = vst.msk [vmem:[#allocation2 + $0x20] sm:$0xff] %vm1455, %v1392
    %1461 = vst.msk [vmem:[#allocation2 + $0x28] sm:$0xff] %vm1455, %v1394
    %1462 = vst.msk [vmem:[#allocation2 + $0x30] sm:$0xff] %vm1455, %v1396
    %1463 = vst.msk [vmem:[#allocation2 + $0x38] sm:$0xff] %vm1455, %v1398
    %1464 = vst.msk [vmem:[#allocation2 + $0x40] sm:$0xff] %vm1455, %v1400
    %1465 = vst.msk [vmem:[#allocation2 + $0x48] sm:$0xff] %vm1455, %v1402
    %1466 = vst.msk [vmem:[#allocation2 + $0x50] sm:$0xff] %vm1455, %v1404
    %1467 = vst.msk [vmem:[#allocation2 + $0x58] sm:$0xff] %vm1455, %v1406
    %1468 = vst.msk [vmem:[#allocation2 + $0x60] sm:$0xff] %vm1455, %v1408
    %1469 = vst.msk [vmem:[#allocation2 + $0x68] sm:$0xff] %vm1455, %v1410
    %1470 = vst.msk [vmem:[#allocation2 + $0x70] sm:$0xff] %vm1455, %v1412
    %1471 = vst.msk [vmem:[#allocation2 + $0x78] sm:$0xff] %vm1455, %v1414
    %1472 = vst.msk [vmem:[#allocation2 + $0x80] sm:$0xff] %vm1455, %v1416
    %1473 = vst.msk [vmem:[#allocation2 + $0x88] sm:$0xff] %vm1455, %v1418
    %1474 = vst.msk [vmem:[#allocation2 + $0x90] sm:$0xff] %vm1455, %v1420
    %1475 = vst.msk [vmem:[#allocation2 + $0x98] sm:$0xff] %vm1455, %v1422
    %1476 = vst.msk [vmem:[#allocation2 + $0xa0] sm:$0xff] %vm1455, %v1424
    %1477 = vst.msk [vmem:[#allocation2 + $0xa8] sm:$0xff] %vm1455, %v1426
    %1478 = vst.msk [vmem:[#allocation2 + $0xb0] sm:$0xff] %vm1455, %v1428
    %1479 = vst.msk [vmem:[#allocation2 + $0xb8] sm:$0xff] %vm1455, %v1430
    loop: start=0, step=1, limit=2
    $region10: #{tpu_custom_call.1} parent=1 // loop_pre_header
      _
    $region11: #{tpu_custom_call.1} parent=1 // loop_header
      %s1481 = sphi 0, %s1485
      %p1482 = scmp.ge.s32.totalorder %s1481, 2
    $region12: #{tpu_custom_call.1} parent=1 // loop_header_branch
      %1484 = sbr.rel (%p1482) target = $region16
    $region13: #{tpu_custom_call.1} parent=1 // loop_body
      %s1486 = smul.u32 0, 2
      %s1487 = sadd.s32 %s1486, %s1481
      %p1488 = scmp.lt.s32.totalorder %s1487, 1
      %s1489 = scalar_select %p1488, %s1487, 1
      %s1490 = sld [smem:[#allocation4 + %s1489]]
      %s1491 = sld [smem:[#allocation5 + %s1489]]
      %s1492 = smul.u32 %s1481, 96
      %s1493 = sadd.s32 %s1490, %s1492
      %s1494 = scalar_lea.vmem [#allocation2], %s1493
      %v1495 = vld [vmem:[%s1494] sm:$0xff]
      %v1496 = vld [vmem:[%s1494 + $0x8] sm:$0xff]
      %v1497 = vld [vmem:[%s1494 + $0x18] sm:$0xff]
      %v1498 = vld [vmem:[%s1494 + $0x20] sm:$0xff]
      %v1499 = vld [vmem:[%s1494 + $0x30] sm:$0xff]
      %v1500 = vld [vmem:[%s1494 + $0x38] sm:$0xff]
      %v1501 = vld [vmem:[%s1494 + $0x48] sm:$0xff]
      %v1502 = vld [vmem:[%s1494 + $0x50] sm:$0xff]
      %1511 = vrot.lane.b32.xlu0 %v1495, 127
      %v1512 = vpop.permute.xlu0 %1511
      %1513 = vrot.lane.b32.xlu0 %v1496, 127
      %v1514 = vpop.permute.xlu0 %1513
      %1515 = vrot.lane.b32.xlu0 %v1497, 127
      %v1516 = vpop.permute.xlu0 %1515
      %1517 = vrot.lane.b32.xlu0 %v1498, 127
      %v1518 = vpop.permute.xlu0 %1517
      %1519 = vrot.lane.b32.xlu0 %v1499, 127
      %v1520 = vpop.permute.xlu0 %1519
      %1521 = vrot.lane.b32.xlu0 %v1500, 127
      %v1522 = vpop.permute.xlu0 %1521
      %1523 = vrot.lane.b32.xlu0 %v1501, 127
      %v1524 = vpop.permute.xlu0 %1523
      %1525 = vrot.lane.b32.xlu0 %v1502, 127
      %v1526 = vpop.permute.xlu0 %1525
      %1535 = vrot.lane.b32.xlu0 %v1495, 23
      %v1536 = vpop.permute.xlu0 %1535
      %1537 = vrot.lane.b32.xlu0 %v1496, 23
      %v1538 = vpop.permute.xlu0 %1537
      %1539 = vrot.lane.b32.xlu0 %v1497, 23
      %v1540 = vpop.permute.xlu0 %1539
      %1541 = vrot.lane.b32.xlu0 %v1498, 23
      %v1542 = vpop.permute.xlu0 %1541
      %1543 = vrot.lane.b32.xlu0 %v1499, 23
      %v1544 = vpop.permute.xlu0 %1543
      %1545 = vrot.lane.b32.xlu0 %v1500, 23
      %v1546 = vpop.permute.xlu0 %1545
      %1547 = vrot.lane.b32.xlu0 %v1501, 23
      %v1548 = vpop.permute.xlu0 %1547
      %1549 = vrot.lane.b32.xlu0 %v1502, 23
      %v1550 = vpop.permute.xlu0 %1549
      %vm1559 = vcmask 187392
      %v1560 = vsel %vm1559, %v1512, %v1536
      %v1561 = vsel %vm1559, %v1514, %v1538
      %v1562 = vsel %vm1559, %v1516, %v1540
      %v1563 = vsel %vm1559, %v1518, %v1542
      %v1564 = vsel %vm1559, %v1520, %v1544
      %v1565 = vsel %vm1559, %v1522, %v1546
      %v1566 = vsel %vm1559, %v1524, %v1548
      %v1567 = vsel %vm1559, %v1526, %v1550
      %s1568 = sand.u32 %s1491, 1
      %p1569 = scmp.ne.s32.totalorder %s1568, 0
      %s1570 = scalar_select %p1569, 1, 0
      %v1571 = vstv %s1570
      %vm1572 = vcmp.eq.s32.totalorder %v1571, 1
      %v1573 = vsel %vm1572, %v1560, %v1495
      %v1574 = vsel %vm1572, %v1561, %v1496
      %v1575 = vsel %vm1572, %v1562, %v1497
      %v1576 = vsel %vm1572, %v1563, %v1498
      %v1577 = vsel %vm1572, %v1564, %v1499
      %v1578 = vsel %vm1572, %v1565, %v1500
      %v1579 = vsel %vm1572, %v1566, %v1501
      %v1580 = vsel %vm1572, %v1567, %v1502
      %1589 = vrot.lane.b32.xlu0 %v1573, 126
      %v1590 = vpop.permute.xlu0 %1589
      %1591 = vrot.lane.b32.xlu0 %v1574, 126
      %v1592 = vpop.permute.xlu0 %1591
      %1593 = vrot.lane.b32.xlu0 %v1575, 126
      %v1594 = vpop.permute.xlu0 %1593
      %1595 = vrot.lane.b32.xlu0 %v1576, 126
      %v1596 = vpop.permute.xlu0 %1595
      %1597 = vrot.lane.b32.xlu0 %v1577, 126
      %v1598 = vpop.permute.xlu0 %1597
      %1599 = vrot.lane.b32.xlu0 %v1578, 126
      %v1600 = vpop.permute.xlu0 %1599
      %1601 = vrot.lane.b32.xlu0 %v1579, 126
      %v1602 = vpop.permute.xlu0 %1601
      %1603 = vrot.lane.b32.xlu0 %v1580, 126
      %v1604 = vpop.permute.xlu0 %1603
      %1613 = vrot.lane.b32.xlu0 %v1573, 22
      %v1614 = vpop.permute.xlu0 %1613
      %1615 = vrot.lane.b32.xlu0 %v1574, 22
      %v1616 = vpop.permute.xlu0 %1615
      %1617 = vrot.lane.b32.xlu0 %v1575, 22
      %v1618 = vpop.permute.xlu0 %1617
      %1619 = vrot.lane.b32.xlu0 %v1576, 22
      %v1620 = vpop.permute.xlu0 %1619
      %1621 = vrot.lane.b32.xlu0 %v1577, 22
      %v1622 = vpop.permute.xlu0 %1621
      %1623 = vrot.lane.b32.xlu0 %v1578, 22
      %v1624 = vpop.permute.xlu0 %1623
      %1625 = vrot.lane.b32.xlu0 %v1579, 22
      %v1626 = vpop.permute.xlu0 %1625
      %1627 = vrot.lane.b32.xlu0 %v1580, 22
      %v1628 = vpop.permute.xlu0 %1627
      %vm1637 = vcmask 179200
      %v1638 = vsel %vm1637, %v1590, %v1614
      %v1639 = vsel %vm1637, %v1592, %v1616
      %v1640 = vsel %vm1637, %v1594, %v1618
      %v1641 = vsel %vm1637, %v1596, %v1620
      %v1642 = vsel %vm1637, %v1598, %v1622
      %v1643 = vsel %vm1637, %v1600, %v1624
      %v1644 = vsel %vm1637, %v1602, %v1626
      %v1645 = vsel %vm1637, %v1604, %v1628
      %s1646 = sand.u32 %s1491, 2
      %p1647 = scmp.ne.s32.totalorder %s1646, 0
      %s1648 = scalar_select %p1647, 1, 0
      %v1649 = vstv %s1648
      %vm1650 = vcmp.eq.s32.totalorder %v1649, 1
      %v1651 = vsel %vm1650, %v1638, %v1573
      %v1652 = vsel %vm1650, %v1639, %v1574
      %v1653 = vsel %vm1650, %v1640, %v1575
      %v1654 = vsel %vm1650, %v1641, %v1576
      %v1655 = vsel %vm1650, %v1642, %v1577
      %v1656 = vsel %vm1650, %v1643, %v1578
      %v1657 = vsel %vm1650, %v1644, %v1579
      %v1658 = vsel %vm1650, %v1645, %v1580
      %1667 = vrot.lane.b32.xlu0 %v1651, 124
      %v1668 = vpop.permute.xlu0 %1667
      %1669 = vrot.lane.b32.xlu0 %v1652, 124
      %v1670 = vpop.permute.xlu0 %1669
      %1671 = vrot.lane.b32.xlu0 %v1653, 124
      %v1672 = vpop.permute.xlu0 %1671
      %1673 = vrot.lane.b32.xlu0 %v1654, 124
      %v1674 = vpop.permute.xlu0 %1673
      %1675 = vrot.lane.b32.xlu0 %v1655, 124
      %v1676 = vpop.permute.xlu0 %1675
      %1677 = vrot.lane.b32.xlu0 %v1656, 124
      %v1678 = vpop.permute.xlu0 %1677
      %1679 = vrot.lane.b32.xlu0 %v1657, 124
      %v1680 = vpop.permute.xlu0 %1679
      %1681 = vrot.lane.b32.xlu0 %v1658, 124
      %v1682 = vpop.permute.xlu0 %1681
      %1691 = vrot.lane.b32.xlu0 %v1651, 20
      %v1692 = vpop.permute.xlu0 %1691
      %1693 = vrot.lane.b32.xlu0 %v1652, 20
      %v1694 = vpop.permute.xlu0 %1693
      %1695 = vrot.lane.b32.xlu0 %v1653, 20
      %v1696 = vpop.permute.xlu0 %1695
      %1697 = vrot.lane.b32.xlu0 %v1654, 20
      %v1698 = vpop.permute.xlu0 %1697
      %1699 = vrot.lane.b32.xlu0 %v1655, 20
      %v1700 = vpop.permute.xlu0 %1699
      %1701 = vrot.lane.b32.xlu0 %v1656, 20
      %v1702 = vpop.permute.xlu0 %1701
      %1703 = vrot.lane.b32.xlu0 %v1657, 20
      %v1704 = vpop.permute.xlu0 %1703
      %1705 = vrot.lane.b32.xlu0 %v1658, 20
      %v1706 = vpop.permute.xlu0 %1705
      %vm1715 = vcmask 162816
      %v1716 = vsel %vm1715, %v1668, %v1692
      %v1717 = vsel %vm1715, %v1670, %v1694
      %v1718 = vsel %vm1715, %v1672, %v1696
      %v1719 = vsel %vm1715, %v1674, %v1698
      %v1720 = vsel %vm1715, %v1676, %v1700
      %v1721 = vsel %vm1715, %v1678, %v1702
      %v1722 = vsel %vm1715, %v1680, %v1704
      %v1723 = vsel %vm1715, %v1682, %v1706
      %s1724 = sand.u32 %s1491, 4
      %p1725 = scmp.ne.s32.totalorder %s1724, 0
      %s1726 = scalar_select %p1725, 1, 0
      %v1727 = vstv %s1726
      %vm1728 = vcmp.eq.s32.totalorder %v1727, 1
      %v1729 = vsel %vm1728, %v1716, %v1651
      %v1730 = vsel %vm1728, %v1717, %v1652
      %v1731 = vsel %vm1728, %v1718, %v1653
      %v1732 = vsel %vm1728, %v1719, %v1654
      %v1733 = vsel %vm1728, %v1720, %v1655
      %v1734 = vsel %vm1728, %v1721, %v1656
      %v1735 = vsel %vm1728, %v1722, %v1657
      %v1736 = vsel %vm1728, %v1723, %v1658
      %1745 = vrot.lane.b32.xlu0 %v1729, 120
      %v1746 = vpop.permute.xlu0 %1745
      %1747 = vrot.lane.b32.xlu0 %v1730, 120
      %v1748 = vpop.permute.xlu0 %1747
      %1749 = vrot.lane.b32.xlu0 %v1731, 120
      %v1750 = vpop.permute.xlu0 %1749
      %1751 = vrot.lane.b32.xlu0 %v1732, 120
      %v1752 = vpop.permute.xlu0 %1751
      %1753 = vrot.lane.b32.xlu0 %v1733, 120
      %v1754 = vpop.permute.xlu0 %1753
      %1755 = vrot.lane.b32.xlu0 %v1734, 120
      %v1756 = vpop.permute.xlu0 %1755
      %1757 = vrot.lane.b32.xlu0 %v1735, 120
      %v1758 = vpop.permute.xlu0 %1757
      %1759 = vrot.lane.b32.xlu0 %v1736, 120
      %v1760 = vpop.permute.xlu0 %1759
      %1769 = vrot.lane.b32.xlu0 %v1729, 16
      %v1770 = vpop.permute.xlu0 %1769
      %1771 = vrot.lane.b32.xlu0 %v1730, 16
      %v1772 = vpop.permute.xlu0 %1771
      %1773 = vrot.lane.b32.xlu0 %v1731, 16
      %v1774 = vpop.permute.xlu0 %1773
      %1775 = vrot.lane.b32.xlu0 %v1732, 16
      %v1776 = vpop.permute.xlu0 %1775
      %1777 = vrot.lane.b32.xlu0 %v1733, 16
      %v1778 = vpop.permute.xlu0 %1777
      %1779 = vrot.lane.b32.xlu0 %v1734, 16
      %v1780 = vpop.permute.xlu0 %1779
      %1781 = vrot.lane.b32.xlu0 %v1735, 16
      %v1782 = vpop.permute.xlu0 %1781
      %1783 = vrot.lane.b32.xlu0 %v1736, 16
      %v1784 = vpop.permute.xlu0 %1783
      %vm1793 = vcmask 130048
      %v1794 = vsel %vm1793, %v1746, %v1770
      %v1795 = vsel %vm1793, %v1748, %v1772
      %v1796 = vsel %vm1793, %v1750, %v1774
      %v1797 = vsel %vm1793, %v1752, %v1776
      %v1798 = vsel %vm1793, %v1754, %v1778
      %v1799 = vsel %vm1793, %v1756, %v1780
      %v1800 = vsel %vm1793, %v1758, %v1782
      %v1801 = vsel %vm1793, %v1760, %v1784
      %s1802 = sand.u32 %s1491, 8
      %p1803 = scmp.ne.s32.totalorder %s1802, 0
      %s1804 = scalar_select %p1803, 1, 0
      %v1805 = vstv %s1804
      %vm1806 = vcmp.eq.s32.totalorder %v1805, 1
      %v1807 = vsel %vm1806, %v1794, %v1729
      %v1808 = vsel %vm1806, %v1795, %v1730
      %v1809 = vsel %vm1806, %v1796, %v1731
      %v1810 = vsel %vm1806, %v1797, %v1732
      %v1811 = vsel %vm1806, %v1798, %v1733
      %v1812 = vsel %vm1806, %v1799, %v1734
      %v1813 = vsel %vm1806, %v1800, %v1735
      %v1814 = vsel %vm1806, %v1801, %v1736
      %s1815 = smul.u32 %s1481, 64
      %s1816 = scalar_lea.vmem [#allocation9], %s1815
      %1817 = vst.msk [vmem:[%s1816] sm:$0xff] %vm1793, %v1807
      %1818 = vst.msk [vmem:[%s1816 + $0x8] sm:$0xff] %vm1793, %v1808
      %1819 = vst.msk [vmem:[%s1816 + $0x10] sm:$0xff] %vm1793, %v1809
      %1820 = vst.msk [vmem:[%s1816 + $0x18] sm:$0xff] %vm1793, %v1810
      %1821 = vst.msk [vmem:[%s1816 + $0x20] sm:$0xff] %vm1793, %v1811
      %1822 = vst.msk [vmem:[%s1816 + $0x28] sm:$0xff] %vm1793, %v1812
      %1823 = vst.msk [vmem:[%s1816 + $0x30] sm:$0xff] %vm1793, %v1813
      %1824 = vst.msk [vmem:[%s1816 + $0x38] sm:$0xff] %vm1793, %v1814
    $region14: #{tpu_custom_call.1} parent=1 // loop_footer
      %s1485 = sadd.s32 1, %s1481
    $region15: #{tpu_custom_call.1} parent=1 // loop_footer_branch
      %1480 = sbr.rel target = $region11
    $region16: #{tpu_custom_call.1} parent=1 // loop_exit
      _
    // Predicated region
    $region17: #{tpu_custom_call.1} parent=1 // pred_check
      _
    $region18: #{tpu_custom_call.1} parent=1 // pred_check_branch
      %1826 = sbr.rel (0) target = $region20
    $region19: #{tpu_custom_call.1} parent=1 // pred_region
      %s1828 = ssub.s32 2048, 2048
      %1829 = vsyncadd [#allocation8], %s1828
      %s1830 = sshll.u32 [#allocation9], 4
      %s1831 = int_to_ptr.vmem [resolvable:$true] %s1830
      %1836 = dma.vmem_to_hbm [thread:$0]  %s1831, 2048, %s3, [#allocation8], 128, 128, 8
    $region20: #{tpu_custom_call.1} parent=1 // pred_fallthru
      _
    // Predicated region
    $region21: #{tpu_custom_call.1} parent=1 // pred_check
      _
    $region22: #{tpu_custom_call.1} parent=1 // pred_check_branch
      %1838 = sbr.rel (0) target = $region24
    $region23: #{tpu_custom_call.1} parent=1 // pred_region
      %1839 = dma.done [#allocation8], 2048
    $region24: #{tpu_custom_call.1} parent=1 // pred_fallthru
      _
    %1840 = vsyncpa [#allocation7], 1
    %1841 = vsyncpa [#allocation8], 1

</llo_original>
